<compile_context>
chip_gen: v7x
topology: tpu7x:2x2x1
jax: 0.10.0
libtpu: 0.0.40
codegen_flags: <defaults>
</compile_context>

<pallas_src>
import math
from functools import partial

import jax
import jax.numpy as jnp
from jax import lax
from jax.experimental import pallas as pl
from jax.experimental.pallas import tpu as pltpu

LN_EPS = 1e-5


def _layernorm(x, gamma, beta):
    # Biased-variance LayerNorm (eps=1e-5) + affine, statistics in f32
    # (matches torch.nn.LayerNorm).
    x = x.astype(jnp.float32)
    mu = jnp.mean(x, axis=-1, keepdims=True)
    var = jnp.mean((x - mu) * (x - mu), axis=-1, keepdims=True)
    xn = (x - mu) * lax.rsqrt(var + LN_EPS)
    return xn * gamma + beta


def _ln_proj(x, g, b, w_bf16, c):
    # LayerNorm in f32, matmul operands in bf16, f32 accumulation on the MXU.
    xn = _layernorm(x, g, b).astype(jnp.bfloat16)
    return jnp.dot(xn, w_bf16, preferred_element_type=jnp.float32) + c


def _attention_kernel(
    q_ref, k_ref, v_ref,
    gq_ref, bq_ref, wq_ref, cq_ref,
    gk_ref, bk_ref, wk_ref, ck_ref,
    gv_ref, bv_ref, wv_ref, cv_ref,
    gw_ref, bw_ref, ww_ref, cw_ref,
    o_ref,
    kb_ref, vb_ref, acc_ref,
    *, heads: int,
):
    # q_ref: (1, TQ, D)   k_ref/v_ref: (1, Lk, D)
    # weights: (D, D) bf16   gains/biases: (1, D) f32
    # kb_ref/vb_ref: (Lk, D) bf16 VMEM scratch (projected K/V, computed once per batch)
    # acc_ref: (TQ, D) f32 VMEM scratch (merged-head attention output)
    d_model = q_ref.shape[-1]
    dim = d_model // heads

    # K/V LayerNorm + projection run only on the first q-tile of each batch; the
    # projected bf16 K/V persist in VMEM scratch across the (sequential,
    # "arbitrary") q-tile axis and are reused by every later q-tile.
    @pl.when(pl.program_id(1) == 0)
    def _():
        kb_ref[...] = _ln_proj(
            k_ref[0], gk_ref[...], bk_ref[...], wk_ref[...], ck_ref[...]
        ).astype(jnp.bfloat16)
        vb_ref[...] = _ln_proj(
            v_ref[0], gv_ref[...], bv_ref[...], wv_ref[...], cv_ref[...]
        ).astype(jnp.bfloat16)

    # Q projection (1/sqrt(head_dim) is already folded into Wq/bq at prep time).
    qb = _ln_proj(
        q_ref[0], gq_ref[...], bq_ref[...], wq_ref[...], cq_ref[...]
    ).astype(jnp.bfloat16)
    kb = kb_ref[...]
    vb = vb_ref[...]

    # Per-head attention, writing each head's output straight into its
    # merged-head scratch slice (no lane-axis concatenate).
    # heads is small & static here -> unrolled at trace time.  For heads >= 8
    # switch to lax.fori_loop with pl.ds(h*dim, dim) + pl.multiple_of; for
    # production pad head_dim to a multiple of 128 (or batch all heads in one
    # dot_general) to keep slices lane-dense and stores unmasked.
    for h in range(heads):
        sl = slice(h * dim, (h + 1) * dim)
        # QK^T via dot_general contracting the feature dim — no explicit K transpose.
        s = lax.dot_general(
            qb[:, sl], kb[:, sl],
            dimension_numbers=(((1,), (1,)), ((), ())),
            preferred_element_type=jnp.float32,
        )  # (TQ, Lk) f32
        s = s - jnp.max(s, axis=-1, keepdims=True)
        p = jnp.exp(s)
        # approx=True: EUP reciprocal (free slot); rows sum to 1 only to ~1e-3.
        p = p * pl.reciprocal(jnp.sum(p, axis=-1, keepdims=True), approx=True)
        acc_ref[:, sl] = jnp.dot(
            p.astype(jnp.bfloat16), vb[:, sl], preferred_element_type=jnp.float32)

    # Output LayerNorm + projection from the merged-head scratch.
    out = _ln_proj(acc_ref[...], gw_ref[...], bw_ref[...], ww_ref[...], cw_ref[...])
    o_ref[0] = out.astype(o_ref.dtype)


def _vmem_capacity_bytes() -> int:
    try:
        return int(pltpu.get_tpu_info().vmem_capacity_bytes)
    except Exception:
        return 64 * 1024 * 1024  # conservative (v7x-sized) fallback


def _pick_q_tile(lq: int, vmem_bytes: int) -> int:
    """Largest Lq tile <= max_tile that is a multiple of 8 and divides Lq.

    max_tile is gated by the local chip's VMEM: 512 on 128-MiB parts
    (v5e/v6e), 256 on 64-MiB parts (v7x-class)."""
    max_tile = 512 if vmem_bytes >= 100 * 1024 * 1024 else 256
    if lq <= max_tile:
        return lq
    for t in range(max_tile, 0, -8):
        if lq % t == 0:
            return t
    return lq


def prepare_params(params, *, heads):
    """One-time parameter preparation (constant fold — do NOT redo per call):
      * fold 1/sqrt(head_dim) into the Q projection weight and bias,
      * cast projection weights (pre-transposed to (D_in, D_out)) to bf16,
      * keep LayerNorm gains/betas and linear biases in f32.
    Returns the flat list of 16 arrays the kernel expects."""
    d_model = params["q"][2].shape[0]
    dim = d_model // heads
    scale = 1.0 / math.sqrt(dim)

    prepared = []
    for name in ("q", "k", "v", "w"):
        g, be, wt, c = params[name]
        wt = jnp.asarray(wt, jnp.float32)
        c = jnp.asarray(c, jnp.float32).reshape(1, d_model)
        if name == "q":
            wt = wt * scale
            c = c * scale
        prepared += [
            jnp.asarray(g, jnp.float32).reshape(1, d_model),
            jnp.asarray(be, jnp.float32).reshape(1, d_model),
            wt.astype(jnp.bfloat16),   # bf16 MXU operand; halves VMEM/DMA footprint
            c,
        ]
    return prepared


def attention_forward(q, k, v, prepared_params, *, heads):
    """q: (B, Lq, D), k/v: (B, Lk, D); prepared_params from prepare_params()."""
    B, Lq, D = q.shape
    Lk = k.shape[1]
    assert D % heads == 0
    # D should be a multiple of 128 for lane-dense (unmasked) output stores in
    # production; the toy D=32 equals the full array dim so it is still legal.

    vmem_cap = _vmem_capacity_bytes()
    q_tile = _pick_q_tile(Lq, vmem_cap)
    n_q = Lq // q_tile

    # Constant-index params: single-buffered — double-buffering constant blocks
    # only wastes VMEM (an extra 8*D^2 bytes for the four bf16 weights).
    single = pl.Buffered(1)
    vec_spec = pl.BlockSpec((1, D), lambda b, i: (0, 0), pipeline_mode=single)
    mat_spec = pl.BlockSpec((D, D), lambda b, i: (0, 0), pipeline_mode=single)

    seq_spec_q = pl.BlockSpec((1, q_tile, D), lambda b, i: (b, i, 0))
    # K/V block index only changes per batch, so its DMA happens once per batch.
    seq_spec_kv = pl.BlockSpec((1, Lk, D), lambda b, i: (b, 0, 0))
    out_spec = pl.BlockSpec((1, q_tile, D), lambda b, i: (b, i, 0))

    param_specs = [vec_spec, vec_spec, mat_spec, vec_spec] * 4

    # Cost estimate (matches the kernel: Q/W projections over Lq, K/V over Lk
    # once per batch, plus per-head QK^T and PV).
    flops = 2 * B * (2 * Lq + 2 * Lk) * D * D + 4 * B * Lq * Lk * D
    transcendentals = B * heads * Lq * Lk
    bytes_accessed = (
        4 * B * (Lq + 2 * Lk) * D      # q/k/v inputs (f32)
        + 4 * B * Lq * D               # output (f32)
        + 4 * (2 * D * D + 3 * 4 * D)  # bf16 weights + f32 gains/betas/biases
    )
    cost = pl.CostEstimate(
        flops=int(flops),
        transcendentals=int(transcendentals),
        bytes_accessed=int(bytes_accessed),
    )

    # Raise the scoped-VMEM limit, capped below physical VMEM for the local chip.
    vmem_limit = int(min(96 * 1024 * 1024, (vmem_cap * 3) // 4))

    return pl.pallas_call(
        partial(_attention_kernel, heads=heads),
        out_shape=jax.ShapeDtypeStruct((B, Lq, D), q.dtype),
        grid_spec=pltpu.PrefetchScalarGridSpec(
            num_scalar_prefetch=0,
            grid=(B, n_q),
            in_specs=[seq_spec_q, seq_spec_kv, seq_spec_kv] + param_specs,
            out_specs=out_spec,
            scratch_shapes=[
                pltpu.VMEM((Lk, D), jnp.bfloat16),    # projected K (per batch)
                pltpu.VMEM((Lk, D), jnp.bfloat16),    # projected V (per batch)
                pltpu.VMEM((q_tile, D), jnp.float32),  # merged-head attention out
            ],
        ),
        compiler_params=pltpu.CompilerParams(
            # Batch axis "parallel" (megacore-shardable); q-tile axis "arbitrary"
            # so the per-batch K/V scratch written at program_id(1)==0 is reused
            # sequentially by later q-tiles on the same core.
            dimension_semantics=("parallel", "arbitrary"),
            vmem_limit_bytes=vmem_limit,
        ),
        cost_estimate=cost,
    )(q, k, v, *prepared_params)


# ---------------- pure-JAX reference (mirrors the PyTorch module, all f32) ----------------
def _reference(q, k, v, params, *, heads):
    def ln_proj(x, p):
        g, b, wt, c = p
        mu = jnp.mean(x, axis=-1, keepdims=True)
        var = jnp.mean((x - mu) ** 2, axis=-1, keepdims=True)
        xn = (x - mu) / jnp.sqrt(var + LN_EPS) * g + b
        return xn @ wt + c

    B, Lq, D = q.shape
    dim = D // heads
    qp = ln_proj(q, params["q"]).reshape(B, Lq, heads, dim).transpose(0, 2, 1, 3)
    kp = ln_proj(k, params["k"]).reshape(B, -1, heads, dim).transpose(0, 2, 1, 3)
    vp = ln_proj(v, params["v"]).reshape(B, -1, heads, dim).transpose(0, 2, 1, 3)
    s = jnp.einsum("bhqd,bhkd->bhqk", qp, kp) / math.sqrt(dim)
    p = jax.nn.softmax(s, axis=-1)
    o = jnp.einsum("bhqk,bhkd->bhqd", p, vp).transpose(0, 2, 1, 3).reshape(B, Lq, D)
    return ln_proj(o, params["w"])


def _make_params(key, d_model):
    params = {}
    for i, name in enumerate(("q", "k", "v", "w")):
        k1, k2, k3, k4 = jax.random.split(jax.random.fold_in(key, i), 4)
        gamma = 1.0 + 0.1 * jax.random.normal(k1, (1, d_model), jnp.float32)
        beta = 0.1 * jax.random.normal(k2, (1, d_model), jnp.float32)
        # nn.Linear weight is (out, in); pre-transposed to (in, out) for the kernel.
        bound = 1.0 / math.sqrt(d_model)
        w_t = jax.random.uniform(k3, (d_model, d_model), jnp.float32, -bound, bound)
        bias = jax.random.uniform(k4, (1, d_model), jnp.float32, -bound, bound)
        params[name] = (gamma, beta, w_t, bias)
    return params


if __name__ == "__main__":
    B, Lq, Lk, d_model, heads = 2, 8, 16, 32, 4

    key = jax.random.PRNGKey(0)
    kq, kk, kv, kp = jax.random.split(key, 4)
    q = jax.random.normal(kq, (B, Lq, d_model), jnp.float32)
    k = jax.random.normal(kk, (B, Lk, d_model), jnp.float32)
    v = jax.random.normal(kv, (B, Lk, d_model), jnp.float32)
    params = _make_params(kp, d_model)

    prepared = prepare_params(params, heads=heads)   # one-time constant fold
    out = attention_forward(q, k, v, prepared, heads=heads)
    out = jax.block_until_ready(out)

    ref = _reference(q, k, v, params, heads=heads)
    assert out.shape == (B, Lq, d_model)
    # bf16 MXU operands + approx softmax reciprocal vs. a pure-f32 reference.
    assert jnp.allclose(out, ref, atol=3e-2, rtol=3e-2), "mismatch vs reference"

    print("KERNEL_OK")
</pallas_src>

<mosaic_0001>
module attributes {stable_mosaic.version = 11 : i64} {
  func.func @_attention_kernel(%arg0: i32, %arg1: i32, %arg2: memref<1x8x32xf32, #tpu.memory_space<vmem>>, %arg3: memref<1x16x32xf32, #tpu.memory_space<vmem>>, %arg4: memref<1x16x32xf32, #tpu.memory_space<vmem>>, %arg5: memref<1x32xf32, #tpu.memory_space<vmem>>, %arg6: memref<1x32xf32, #tpu.memory_space<vmem>>, %arg7: memref<32x32xbf16, #tpu.memory_space<vmem>>, %arg8: memref<1x32xf32, #tpu.memory_space<vmem>>, %arg9: memref<1x32xf32, #tpu.memory_space<vmem>>, %arg10: memref<1x32xf32, #tpu.memory_space<vmem>>, %arg11: memref<32x32xbf16, #tpu.memory_space<vmem>>, %arg12: memref<1x32xf32, #tpu.memory_space<vmem>>, %arg13: memref<1x32xf32, #tpu.memory_space<vmem>>, %arg14: memref<1x32xf32, #tpu.memory_space<vmem>>, %arg15: memref<32x32xbf16, #tpu.memory_space<vmem>>, %arg16: memref<1x32xf32, #tpu.memory_space<vmem>>, %arg17: memref<1x32xf32, #tpu.memory_space<vmem>>, %arg18: memref<1x32xf32, #tpu.memory_space<vmem>>, %arg19: memref<32x32xbf16, #tpu.memory_space<vmem>>, %arg20: memref<1x32xf32, #tpu.memory_space<vmem>>, %arg21: memref<1x8x32xf32, #tpu.memory_space<vmem>>, %arg22: memref<16x32xbf16, #tpu.memory_space<vmem>>, %arg23: memref<16x32xbf16, #tpu.memory_space<vmem>>, %arg24: memref<8x32xf32, #tpu.memory_space<vmem>>) attributes {dimension_semantics = [#tpu.dimension_semantics<parallel>, #tpu.dimension_semantics<arbitrary>], iteration_bounds = array<i64: 2, 1>, scalar_prefetch = 0 : i64, scratch_operands = 3 : i64, tpu.core_type = #tpu.core_type<tc>, window_params = [{transform_indices = @transform_0, window_bounds = array<i64: 1, 8, 32>}, {transform_indices = @transform_1, window_bounds = array<i64: 1, 16, 32>}, {transform_indices = @transform_2, window_bounds = array<i64: 1, 16, 32>}, {pipeline_mode = #tpu.pipeline_mode<synchronous>, transform_indices = @transform_3, window_bounds = array<i64: 1, 32>}, {pipeline_mode = #tpu.pipeline_mode<synchronous>, transform_indices = @transform_4, window_bounds = array<i64: 1, 32>}, {pipeline_mode = #tpu.pipeline_mode<synchronous>, transform_indices = @transform_5, window_bounds = array<i64: 32, 32>}, {pipeline_mode = #tpu.pipeline_mode<synchronous>, transform_indices = @transform_6, window_bounds = array<i64: 1, 32>}, {pipeline_mode = #tpu.pipeline_mode<synchronous>, transform_indices = @transform_7, window_bounds = array<i64: 1, 32>}, {pipeline_mode = #tpu.pipeline_mode<synchronous>, transform_indices = @transform_8, window_bounds = array<i64: 1, 32>}, {pipeline_mode = #tpu.pipeline_mode<synchronous>, transform_indices = @transform_9, window_bounds = array<i64: 32, 32>}, {pipeline_mode = #tpu.pipeline_mode<synchronous>, transform_indices = @transform_10, window_bounds = array<i64: 1, 32>}, {pipeline_mode = #tpu.pipeline_mode<synchronous>, transform_indices = @transform_11, window_bounds = array<i64: 1, 32>}, {pipeline_mode = #tpu.pipeline_mode<synchronous>, transform_indices = @transform_12, window_bounds = array<i64: 1, 32>}, {pipeline_mode = #tpu.pipeline_mode<synchronous>, transform_indices = @transform_13, window_bounds = array<i64: 32, 32>}, {pipeline_mode = #tpu.pipeline_mode<synchronous>, transform_indices = @transform_14, window_bounds = array<i64: 1, 32>}, {pipeline_mode = #tpu.pipeline_mode<synchronous>, transform_indices = @transform_15, window_bounds = array<i64: 1, 32>}, {pipeline_mode = #tpu.pipeline_mode<synchronous>, transform_indices = @transform_16, window_bounds = array<i64: 1, 32>}, {pipeline_mode = #tpu.pipeline_mode<synchronous>, transform_indices = @transform_17, window_bounds = array<i64: 32, 32>}, {pipeline_mode = #tpu.pipeline_mode<synchronous>, transform_indices = @transform_18, window_bounds = array<i64: 1, 32>}, {transform_indices = @transform_19, window_bounds = array<i64: 1, 8, 32>}]} {
    %c0_i32 = arith.constant 0 : i32
    %0 = arith.cmpi eq, %arg1, %c0_i32 : i32
    %1 = arith.extui %0 : i1 to i32
    %c0_i32_0 = arith.constant 0 : i32
    %2 = arith.cmpi ne, %1, %c0_i32_0 : i32
    scf.if %2 {
      %c0_60 = arith.constant 0 : index
      %c0_61 = arith.constant 0 : index
      %c0_62 = arith.constant 0 : index
      %144 = vector.load %arg3[%c0_60, %c0_61, %c0_62] : memref<1x16x32xf32, #tpu.memory_space<vmem>>, vector<1x16x32xf32>
      %145 = vector.shape_cast %144 : vector<1x16x32xf32> to vector<16x32xf32>
      %c0_63 = arith.constant 0 : index
      %c0_64 = arith.constant 0 : index
      %146 = vector.load %arg9[%c0_63, %c0_64] : memref<1x32xf32, #tpu.memory_space<vmem>>, vector<1x32xf32>
      %c0_65 = arith.constant 0 : index
      %c0_66 = arith.constant 0 : index
      %147 = vector.load %arg10[%c0_65, %c0_66] : memref<1x32xf32, #tpu.memory_space<vmem>>, vector<1x32xf32>
      %c0_67 = arith.constant 0 : index
      %c0_68 = arith.constant 0 : index
      %148 = vector.load %arg11[%c0_67, %c0_68] : memref<32x32xbf16, #tpu.memory_space<vmem>>, vector<32x32xbf16>
      %c0_69 = arith.constant 0 : index
      %c0_70 = arith.constant 0 : index
      %149 = vector.load %arg12[%c0_69, %c0_70] : memref<1x32xf32, #tpu.memory_space<vmem>>, vector<1x32xf32>
      %cst_71 = arith.constant dense<0.000000e+00> : vector<16xf32>
      %150 = vector.multi_reduction <add>, %145, %cst_71 [1] : vector<16x32xf32> to vector<16xf32>
      %151 = vector.shape_cast %150 : vector<16xf32> to vector<16x1xf32>
      %cst_72 = arith.constant 3.200000e+01 : f32
      %152 = vector.broadcast %cst_72 : f32 to vector<16x1xf32>
      %153 = arith.divf %151, %152 : vector<16x1xf32>
      %154 = vector.broadcast %153 : vector<16x1xf32> to vector<16x32xf32>
      %155 = arith.subf %145, %154 : vector<16x32xf32>
      %156 = vector.broadcast %153 : vector<16x1xf32> to vector<16x32xf32>
      %157 = arith.subf %145, %156 : vector<16x32xf32>
      %158 = arith.mulf %155, %157 : vector<16x32xf32>
      %cst_73 = arith.constant dense<0.000000e+00> : vector<16xf32>
      %159 = vector.multi_reduction <add>, %158, %cst_73 [1] : vector<16x32xf32> to vector<16xf32>
      %160 = vector.shape_cast %159 : vector<16xf32> to vector<16x1xf32>
      %cst_74 = arith.constant 3.200000e+01 : f32
      %161 = vector.broadcast %cst_74 : f32 to vector<16x1xf32>
      %162 = arith.divf %160, %161 : vector<16x1xf32>
      %163 = vector.broadcast %153 : vector<16x1xf32> to vector<16x32xf32>
      %164 = arith.subf %145, %163 : vector<16x32xf32>
      %cst_75 = arith.constant 9.99999974E-6 : f32
      %165 = vector.broadcast %cst_75 : f32 to vector<16x1xf32>
      %166 = arith.addf %162, %165 : vector<16x1xf32>
      %167 = math.rsqrt %166 : vector<16x1xf32>
      %168 = vector.broadcast %167 : vector<16x1xf32> to vector<16x32xf32>
      %169 = arith.mulf %164, %168 : vector<16x32xf32>
      %170 = vector.broadcast %146 : vector<1x32xf32> to vector<16x32xf32>
      %171 = arith.mulf %169, %170 : vector<16x32xf32>
      %172 = vector.broadcast %147 : vector<1x32xf32> to vector<16x32xf32>
      %173 = arith.addf %171, %172 : vector<16x32xf32>
      %174 = arith.truncf %173 : vector<16x32xf32> to vector<16x32xbf16>
      %cst_76 = arith.constant dense<0.000000e+00> : vector<16x32xf32>
      %175 = tpu.matmul %174, %148, %cst_76 {dimension_numbers = #tpu.dot_dimension_numbers<[1], [0], [0], [1], [0, 0, 1, 1], [], []>} : vector<16x32xbf16>, vector<32x32xbf16>, vector<16x32xf32> -> vector<16x32xf32>
      %176 = vector.broadcast %149 : vector<1x32xf32> to vector<16x32xf32>
      %177 = arith.addf %175, %176 : vector<16x32xf32>
      %178 = arith.truncf %177 : vector<16x32xf32> to vector<16x32xbf16>
      %c0_77 = arith.constant 0 : index
      %c0_78 = arith.constant 0 : index
      %179 = vector.load %arg22[%c0_77, %c0_78] : memref<16x32xbf16, #tpu.memory_space<vmem>>, vector<16x32xbf16>
      tpu.vector_store %arg22[%c0_77, %c0_78], %178 {strides = array<i32>} : memref<16x32xbf16, #tpu.memory_space<vmem>>, vector<16x32xbf16>,
      %c0_79 = arith.constant 0 : index
      %c0_80 = arith.constant 0 : index
      %c0_81 = arith.constant 0 : index
      %180 = vector.load %arg4[%c0_79, %c0_80, %c0_81] : memref<1x16x32xf32, #tpu.memory_space<vmem>>, vector<1x16x32xf32>
      %181 = vector.shape_cast %180 : vector<1x16x32xf32> to vector<16x32xf32>
      %c0_82 = arith.constant 0 : index
      %c0_83 = arith.constant 0 : index
      %182 = vector.load %arg13[%c0_82, %c0_83] : memref<1x32xf32, #tpu.memory_space<vmem>>, vector<1x32xf32>
      %c0_84 = arith.constant 0 : index
      %c0_85 = arith.constant 0 : index
      %183 = vector.load %arg14[%c0_84, %c0_85] : memref<1x32xf32, #tpu.memory_space<vmem>>, vector<1x32xf32>
      %c0_86 = arith.constant 0 : index
      %c0_87 = arith.constant 0 : index
      %184 = vector.load %arg15[%c0_86, %c0_87] : memref<32x32xbf16, #tpu.memory_space<vmem>>, vector<32x32xbf16>
      %c0_88 = arith.constant 0 : index
      %c0_89 = arith.constant 0 : index
      %185 = vector.load %arg16[%c0_88, %c0_89] : memref<1x32xf32, #tpu.memory_space<vmem>>, vector<1x32xf32>
      %cst_90 = arith.constant dense<0.000000e+00> : vector<16xf32>
      %186 = vector.multi_reduction <add>, %181, %cst_90 [1] : vector<16x32xf32> to vector<16xf32>
      %187 = vector.shape_cast %186 : vector<16xf32> to vector<16x1xf32>
      %cst_91 = arith.constant 3.200000e+01 : f32
      %188 = vector.broadcast %cst_91 : f32 to vector<16x1xf32>
      %189 = arith.divf %187, %188 : vector<16x1xf32>
      %190 = vector.broadcast %189 : vector<16x1xf32> to vector<16x32xf32>
      %191 = arith.subf %181, %190 : vector<16x32xf32>
      %192 = vector.broadcast %189 : vector<16x1xf32> to vector<16x32xf32>
      %193 = arith.subf %181, %192 : vector<16x32xf32>
      %194 = arith.mulf %191, %193 : vector<16x32xf32>
      %cst_92 = arith.constant dense<0.000000e+00> : vector<16xf32>
      %195 = vector.multi_reduction <add>, %194, %cst_92 [1] : vector<16x32xf32> to vector<16xf32>
      %196 = vector.shape_cast %195 : vector<16xf32> to vector<16x1xf32>
      %cst_93 = arith.constant 3.200000e+01 : f32
      %197 = vector.broadcast %cst_93 : f32 to vector<16x1xf32>
      %198 = arith.divf %196, %197 : vector<16x1xf32>
      %199 = vector.broadcast %189 : vector<16x1xf32> to vector<16x32xf32>
      %200 = arith.subf %181, %199 : vector<16x32xf32>
      %cst_94 = arith.constant 9.99999974E-6 : f32
      %201 = vector.broadcast %cst_94 : f32 to vector<16x1xf32>
      %202 = arith.addf %198, %201 : vector<16x1xf32>
      %203 = math.rsqrt %202 : vector<16x1xf32>
      %204 = vector.broadcast %203 : vector<16x1xf32> to vector<16x32xf32>
      %205 = arith.mulf %200, %204 : vector<16x32xf32>
      %206 = vector.broadcast %182 : vector<1x32xf32> to vector<16x32xf32>
      %207 = arith.mulf %205, %206 : vector<16x32xf32>
      %208 = vector.broadcast %183 : vector<1x32xf32> to vector<16x32xf32>
      %209 = arith.addf %207, %208 : vector<16x32xf32>
      %210 = arith.truncf %209 : vector<16x32xf32> to vector<16x32xbf16>
      %cst_95 = arith.constant dense<0.000000e+00> : vector<16x32xf32>
      %211 = tpu.matmul %210, %184, %cst_95 {dimension_numbers = #tpu.dot_dimension_numbers<[1], [0], [0], [1], [0, 0, 1, 1], [], []>} : vector<16x32xbf16>, vector<32x32xbf16>, vector<16x32xf32> -> vector<16x32xf32>
      %212 = vector.broadcast %185 : vector<1x32xf32> to vector<16x32xf32>
      %213 = arith.addf %211, %212 : vector<16x32xf32>
      %214 = arith.truncf %213 : vector<16x32xf32> to vector<16x32xbf16>
      %c0_96 = arith.constant 0 : index
      %c0_97 = arith.constant 0 : index
      %215 = vector.load %arg23[%c0_96, %c0_97] : memref<16x32xbf16, #tpu.memory_space<vmem>>, vector<16x32xbf16>
      tpu.vector_store %arg23[%c0_96, %c0_97], %214 {strides = array<i32>} : memref<16x32xbf16, #tpu.memory_space<vmem>>, vector<16x32xbf16>,
    } else {
    }
    %c0 = arith.constant 0 : index
    %c0_1 = arith.constant 0 : index
    %c0_2 = arith.constant 0 : index
    %3 = vector.load %arg2[%c0, %c0_1, %c0_2] : memref<1x8x32xf32, #tpu.memory_space<vmem>>, vector<1x8x32xf32>
    %4 = vector.shape_cast %3 : vector<1x8x32xf32> to vector<8x32xf32>
    %c0_3 = arith.constant 0 : index
    %c0_4 = arith.constant 0 : index
    %5 = vector.load %arg5[%c0_3, %c0_4] : memref<1x32xf32, #tpu.memory_space<vmem>>, vector<1x32xf32>
    %c0_5 = arith.constant 0 : index
    %c0_6 = arith.constant 0 : index
    %6 = vector.load %arg6[%c0_5, %c0_6] : memref<1x32xf32, #tpu.memory_space<vmem>>, vector<1x32xf32>
    %c0_7 = arith.constant 0 : index
    %c0_8 = arith.constant 0 : index
    %7 = vector.load %arg7[%c0_7, %c0_8] : memref<32x32xbf16, #tpu.memory_space<vmem>>, vector<32x32xbf16>
    %c0_9 = arith.constant 0 : index
    %c0_10 = arith.constant 0 : index
    %8 = vector.load %arg8[%c0_9, %c0_10] : memref<1x32xf32, #tpu.memory_space<vmem>>, vector<1x32xf32>
    %cst = arith.constant dense<0.000000e+00> : vector<8xf32>
    %9 = vector.multi_reduction <add>, %4, %cst [1] : vector<8x32xf32> to vector<8xf32>
    %10 = vector.shape_cast %9 : vector<8xf32> to vector<8x1xf32>
    %cst_11 = arith.constant 3.200000e+01 : f32
    %11 = vector.broadcast %cst_11 : f32 to vector<8x1xf32>
    %12 = arith.divf %10, %11 : vector<8x1xf32>
    %13 = vector.broadcast %12 : vector<8x1xf32> to vector<8x32xf32>
    %14 = arith.subf %4, %13 : vector<8x32xf32>
    %15 = vector.broadcast %12 : vector<8x1xf32> to vector<8x32xf32>
    %16 = arith.subf %4, %15 : vector<8x32xf32>
    %17 = arith.mulf %14, %16 : vector<8x32xf32>
    %cst_12 = arith.constant dense<0.000000e+00> : vector<8xf32>
    %18 = vector.multi_reduction <add>, %17, %cst_12 [1] : vector<8x32xf32> to vector<8xf32>
    %19 = vector.shape_cast %18 : vector<8xf32> to vector<8x1xf32>
    %cst_13 = arith.constant 3.200000e+01 : f32
    %20 = vector.broadcast %cst_13 : f32 to vector<8x1xf32>
    %21 = arith.divf %19, %20 : vector<8x1xf32>
    %22 = vector.broadcast %12 : vector<8x1xf32> to vector<8x32xf32>
    %23 = arith.subf %4, %22 : vector<8x32xf32>
    %cst_14 = arith.constant 9.99999974E-6 : f32
    %24 = vector.broadcast %cst_14 : f32 to vector<8x1xf32>
    %25 = arith.addf %21, %24 : vector<8x1xf32>
    %26 = math.rsqrt %25 : vector<8x1xf32>
    %27 = vector.broadcast %26 : vector<8x1xf32> to vector<8x32xf32>
    %28 = arith.mulf %23, %27 : vector<8x32xf32>
    %29 = vector.broadcast %5 : vector<1x32xf32> to vector<8x32xf32>
    %30 = arith.mulf %28, %29 : vector<8x32xf32>
    %31 = vector.broadcast %6 : vector<1x32xf32> to vector<8x32xf32>
    %32 = arith.addf %30, %31 : vector<8x32xf32>
    %33 = arith.truncf %32 : vector<8x32xf32> to vector<8x32xbf16>
    %cst_15 = arith.constant dense<0.000000e+00> : vector<8x32xf32>
    %34 = tpu.matmul %33, %7, %cst_15 {dimension_numbers = #tpu.dot_dimension_numbers<[1], [0], [0], [1], [0, 0, 1, 1], [], []>} : vector<8x32xbf16>, vector<32x32xbf16>, vector<8x32xf32> -> vector<8x32xf32>
    %35 = vector.broadcast %8 : vector<1x32xf32> to vector<8x32xf32>
    %36 = arith.addf %34, %35 : vector<8x32xf32>
    %37 = arith.truncf %36 : vector<8x32xf32> to vector<8x32xbf16>
    %c0_16 = arith.constant 0 : index
    %c0_17 = arith.constant 0 : index
    %38 = vector.load %arg22[%c0_16, %c0_17] : memref<16x32xbf16, #tpu.memory_space<vmem>>, vector<16x32xbf16>
    %c0_18 = arith.constant 0 : index
    %c0_19 = arith.constant 0 : index
    %39 = vector.load %arg23[%c0_18, %c0_19] : memref<16x32xbf16, #tpu.memory_space<vmem>>, vector<16x32xbf16>
    %40 = vector.extract_strided_slice %37 {offsets = [0, 0], sizes = [8, 8], strides = [1, 1]} : vector<8x32xbf16> to vector<8x8xbf16>
    %41 = vector.extract_strided_slice %38 {offsets = [0, 0], sizes = [16, 8], strides = [1, 1]} : vector<16x32xbf16> to vector<16x8xbf16>
    %cst_20 = arith.constant dense<0.000000e+00> : vector<8x16xf32>
    %42 = tpu.matmul %40, %41, %cst_20 {dimension_numbers = #tpu.dot_dimension_numbers<[1], [1], [0], [0], [0, 0, 1, 0], [], []>} : vector<8x8xbf16>, vector<16x8xbf16>, vector<8x16xf32> -> vector<8x16xf32>
    %cst_21 = arith.constant dense<0xFF800000> : vector<8xf32>
    %43 = vector.multi_reduction <maximumf>, %42, %cst_21 [1] : vector<8x16xf32> to vector<8xf32>
    %44 = vector.shape_cast %43 : vector<8xf32> to vector<8x1xf32>
    %45 = vector.broadcast %44 : vector<8x1xf32> to vector<8x16xf32>
    %46 = arith.subf %42, %45 : vector<8x16xf32>
    %47 = math.exp %46 : vector<8x16xf32>
    %cst_22 = arith.constant dense<0.000000e+00> : vector<8xf32>
    %48 = vector.multi_reduction <add>, %47, %cst_22 [1] : vector<8x16xf32> to vector<8xf32>
    %49 = vector.shape_cast %48 : vector<8xf32> to vector<8x1xf32>
    %50 = tpu.reciprocal %49 {approx = true} : vector<8x1xf32> -> vector<8x1xf32>
    %51 = vector.broadcast %50 : vector<8x1xf32> to vector<8x16xf32>
    %52 = arith.mulf %47, %51 : vector<8x16xf32>
    %53 = arith.truncf %52 : vector<8x16xf32> to vector<8x16xbf16>
    %54 = vector.extract_strided_slice %39 {offsets = [0, 0], sizes = [16, 8], strides = [1, 1]} : vector<16x32xbf16> to vector<16x8xbf16>
    %cst_23 = arith.constant dense<0.000000e+00> : vector<8x8xf32>
    %55 = tpu.matmul %53, %54, %cst_23 {dimension_numbers = #tpu.dot_dimension_numbers<[1], [0], [0], [1], [0, 0, 1, 1], [], []>} : vector<8x16xbf16>, vector<16x8xbf16>, vector<8x8xf32> -> vector<8x8xf32>
    %c0_24 = arith.constant 0 : index
    %c0_25 = arith.constant 0 : index
    %56 = vector.load %arg24[%c0_24, %c0_25] : memref<8x32xf32, #tpu.memory_space<vmem>>, vector<8x8xf32>
    tpu.vector_store %arg24[%c0_24, %c0_25], %55 {strides = array<i32>} : memref<8x32xf32, #tpu.memory_space<vmem>>, vector<8x8xf32>,
    %57 = vector.extract_strided_slice %37 {offsets = [0, 8], sizes = [8, 8], strides = [1, 1]} : vector<8x32xbf16> to vector<8x8xbf16>
    %58 = vector.extract_strided_slice %38 {offsets = [0, 8], sizes = [16, 8], strides = [1, 1]} : vector<16x32xbf16> to vector<16x8xbf16>
    %cst_26 = arith.constant dense<0.000000e+00> : vector<8x16xf32>
    %59 = tpu.matmul %57, %58, %cst_26 {dimension_numbers = #tpu.dot_dimension_numbers<[1], [1], [0], [0], [0, 0, 1, 0], [], []>} : vector<8x8xbf16>, vector<16x8xbf16>, vector<8x16xf32> -> vector<8x16xf32>
    %cst_27 = arith.constant dense<0xFF800000> : vector<8xf32>
    %60 = vector.multi_reduction <maximumf>, %59, %cst_27 [1] : vector<8x16xf32> to vector<8xf32>
    %61 = vector.shape_cast %60 : vector<8xf32> to vector<8x1xf32>
    %62 = vector.broadcast %61 : vector<8x1xf32> to vector<8x16xf32>
    %63 = arith.subf %59, %62 : vector<8x16xf32>
    %64 = math.exp %63 : vector<8x16xf32>
    %cst_28 = arith.constant dense<0.000000e+00> : vector<8xf32>
    %65 = vector.multi_reduction <add>, %64, %cst_28 [1] : vector<8x16xf32> to vector<8xf32>
    %66 = vector.shape_cast %65 : vector<8xf32> to vector<8x1xf32>
    %67 = tpu.reciprocal %66 {approx = true} : vector<8x1xf32> -> vector<8x1xf32>
    %68 = vector.broadcast %67 : vector<8x1xf32> to vector<8x16xf32>
    %69 = arith.mulf %64, %68 : vector<8x16xf32>
    %70 = arith.truncf %69 : vector<8x16xf32> to vector<8x16xbf16>
    %71 = vector.extract_strided_slice %39 {offsets = [0, 8], sizes = [16, 8], strides = [1, 1]} : vector<16x32xbf16> to vector<16x8xbf16>
    %cst_29 = arith.constant dense<0.000000e+00> : vector<8x8xf32>
    %72 = tpu.matmul %70, %71, %cst_29 {dimension_numbers = #tpu.dot_dimension_numbers<[1], [0], [0], [1], [0, 0, 1, 1], [], []>} : vector<8x16xbf16>, vector<16x8xbf16>, vector<8x8xf32> -> vector<8x8xf32>
    %c0_30 = arith.constant 0 : index
    %c8 = arith.constant 8 : index
    %73 = vector.load %arg24[%c0_30, %c8] : memref<8x32xf32, #tpu.memory_space<vmem>>, vector<8x8xf32>
    tpu.vector_store %arg24[%c0_30, %c8], %72 {strides = array<i32>} : memref<8x32xf32, #tpu.memory_space<vmem>>, vector<8x8xf32>,
    %74 = vector.extract_strided_slice %37 {offsets = [0, 16], sizes = [8, 8], strides = [1, 1]} : vector<8x32xbf16> to vector<8x8xbf16>
    %75 = vector.extract_strided_slice %38 {offsets = [0, 16], sizes = [16, 8], strides = [1, 1]} : vector<16x32xbf16> to vector<16x8xbf16>
    %cst_31 = arith.constant dense<0.000000e+00> : vector<8x16xf32>
    %76 = tpu.matmul %74, %75, %cst_31 {dimension_numbers = #tpu.dot_dimension_numbers<[1], [1], [0], [0], [0, 0, 1, 0], [], []>} : vector<8x8xbf16>, vector<16x8xbf16>, vector<8x16xf32> -> vector<8x16xf32>
    %cst_32 = arith.constant dense<0xFF800000> : vector<8xf32>
    %77 = vector.multi_reduction <maximumf>, %76, %cst_32 [1] : vector<8x16xf32> to vector<8xf32>
    %78 = vector.shape_cast %77 : vector<8xf32> to vector<8x1xf32>
    %79 = vector.broadcast %78 : vector<8x1xf32> to vector<8x16xf32>
    %80 = arith.subf %76, %79 : vector<8x16xf32>
    %81 = math.exp %80 : vector<8x16xf32>
    %cst_33 = arith.constant dense<0.000000e+00> : vector<8xf32>
    %82 = vector.multi_reduction <add>, %81, %cst_33 [1] : vector<8x16xf32> to vector<8xf32>
    %83 = vector.shape_cast %82 : vector<8xf32> to vector<8x1xf32>
    %84 = tpu.reciprocal %83 {approx = true} : vector<8x1xf32> -> vector<8x1xf32>
    %85 = vector.broadcast %84 : vector<8x1xf32> to vector<8x16xf32>
    %86 = arith.mulf %81, %85 : vector<8x16xf32>
    %87 = arith.truncf %86 : vector<8x16xf32> to vector<8x16xbf16>
    %88 = vector.extract_strided_slice %39 {offsets = [0, 16], sizes = [16, 8], strides = [1, 1]} : vector<16x32xbf16> to vector<16x8xbf16>
    %cst_34 = arith.constant dense<0.000000e+00> : vector<8x8xf32>
    %89 = tpu.matmul %87, %88, %cst_34 {dimension_numbers = #tpu.dot_dimension_numbers<[1], [0], [0], [1], [0, 0, 1, 1], [], []>} : vector<8x16xbf16>, vector<16x8xbf16>, vector<8x8xf32> -> vector<8x8xf32>
    %c0_35 = arith.constant 0 : index
    %c16 = arith.constant 16 : index
    %90 = vector.load %arg24[%c0_35, %c16] : memref<8x32xf32, #tpu.memory_space<vmem>>, vector<8x8xf32>
    tpu.vector_store %arg24[%c0_35, %c16], %89 {strides = array<i32>} : memref<8x32xf32, #tpu.memory_space<vmem>>, vector<8x8xf32>,
    %91 = vector.extract_strided_slice %37 {offsets = [0, 24], sizes = [8, 8], strides = [1, 1]} : vector<8x32xbf16> to vector<8x8xbf16>
    %92 = vector.extract_strided_slice %38 {offsets = [0, 24], sizes = [16, 8], strides = [1, 1]} : vector<16x32xbf16> to vector<16x8xbf16>
    %cst_36 = arith.constant dense<0.000000e+00> : vector<8x16xf32>
    %93 = tpu.matmul %91, %92, %cst_36 {dimension_numbers = #tpu.dot_dimension_numbers<[1], [1], [0], [0], [0, 0, 1, 0], [], []>} : vector<8x8xbf16>, vector<16x8xbf16>, vector<8x16xf32> -> vector<8x16xf32>
    %cst_37 = arith.constant dense<0xFF800000> : vector<8xf32>
    %94 = vector.multi_reduction <maximumf>, %93, %cst_37 [1] : vector<8x16xf32> to vector<8xf32>
    %95 = vector.shape_cast %94 : vector<8xf32> to vector<8x1xf32>
    %96 = vector.broadcast %95 : vector<8x1xf32> to vector<8x16xf32>
    %97 = arith.subf %93, %96 : vector<8x16xf32>
    %98 = math.exp %97 : vector<8x16xf32>
    %cst_38 = arith.constant dense<0.000000e+00> : vector<8xf32>
    %99 = vector.multi_reduction <add>, %98, %cst_38 [1] : vector<8x16xf32> to vector<8xf32>
    %100 = vector.shape_cast %99 : vector<8xf32> to vector<8x1xf32>
    %101 = tpu.reciprocal %100 {approx = true} : vector<8x1xf32> -> vector<8x1xf32>
    %102 = vector.broadcast %101 : vector<8x1xf32> to vector<8x16xf32>
    %103 = arith.mulf %98, %102 : vector<8x16xf32>
    %104 = arith.truncf %103 : vector<8x16xf32> to vector<8x16xbf16>
    %105 = vector.extract_strided_slice %39 {offsets = [0, 24], sizes = [16, 8], strides = [1, 1]} : vector<16x32xbf16> to vector<16x8xbf16>
    %cst_39 = arith.constant dense<0.000000e+00> : vector<8x8xf32>
    %106 = tpu.matmul %104, %105, %cst_39 {dimension_numbers = #tpu.dot_dimension_numbers<[1], [0], [0], [1], [0, 0, 1, 1], [], []>} : vector<8x16xbf16>, vector<16x8xbf16>, vector<8x8xf32> -> vector<8x8xf32>
    %c0_40 = arith.constant 0 : index
    %c24 = arith.constant 24 : index
    %107 = vector.load %arg24[%c0_40, %c24] : memref<8x32xf32, #tpu.memory_space<vmem>>, vector<8x8xf32>
    tpu.vector_store %arg24[%c0_40, %c24], %106 {strides = array<i32>} : memref<8x32xf32, #tpu.memory_space<vmem>>, vector<8x8xf32>,
    %c0_41 = arith.constant 0 : index
    %c0_42 = arith.constant 0 : index
    %108 = vector.load %arg24[%c0_41, %c0_42] : memref<8x32xf32, #tpu.memory_space<vmem>>, vector<8x32xf32>
    %c0_43 = arith.constant 0 : index
    %c0_44 = arith.constant 0 : index
    %109 = vector.load %arg17[%c0_43, %c0_44] : memref<1x32xf32, #tpu.memory_space<vmem>>, vector<1x32xf32>
    %c0_45 = arith.constant 0 : index
    %c0_46 = arith.constant 0 : index
    %110 = vector.load %arg18[%c0_45, %c0_46] : memref<1x32xf32, #tpu.memory_space<vmem>>, vector<1x32xf32>
    %c0_47 = arith.constant 0 : index
    %c0_48 = arith.constant 0 : index
    %111 = vector.load %arg19[%c0_47, %c0_48] : memref<32x32xbf16, #tpu.memory_space<vmem>>, vector<32x32xbf16>
    %c0_49 = arith.constant 0 : index
    %c0_50 = arith.constant 0 : index
    %112 = vector.load %arg20[%c0_49, %c0_50] : memref<1x32xf32, #tpu.memory_space<vmem>>, vector<1x32xf32>
    %cst_51 = arith.constant dense<0.000000e+00> : vector<8xf32>
    %113 = vector.multi_reduction <add>, %108, %cst_51 [1] : vector<8x32xf32> to vector<8xf32>
    %114 = vector.shape_cast %113 : vector<8xf32> to vector<8x1xf32>
    %cst_52 = arith.constant 3.200000e+01 : f32
    %115 = vector.broadcast %cst_52 : f32 to vector<8x1xf32>
    %116 = arith.divf %114, %115 : vector<8x1xf32>
    %117 = vector.broadcast %116 : vector<8x1xf32> to vector<8x32xf32>
    %118 = arith.subf %108, %117 : vector<8x32xf32>
    %119 = vector.broadcast %116 : vector<8x1xf32> to vector<8x32xf32>
    %120 = arith.subf %108, %119 : vector<8x32xf32>
    %121 = arith.mulf %118, %120 : vector<8x32xf32>
    %cst_53 = arith.constant dense<0.000000e+00> : vector<8xf32>
    %122 = vector.multi_reduction <add>, %121, %cst_53 [1] : vector<8x32xf32> to vector<8xf32>
    %123 = vector.shape_cast %122 : vector<8xf32> to vector<8x1xf32>
    %cst_54 = arith.constant 3.200000e+01 : f32
    %124 = vector.broadcast %cst_54 : f32 to vector<8x1xf32>
    %125 = arith.divf %123, %124 : vector<8x1xf32>
    %126 = vector.broadcast %116 : vector<8x1xf32> to vector<8x32xf32>
    %127 = arith.subf %108, %126 : vector<8x32xf32>
    %cst_55 = arith.constant 9.99999974E-6 : f32
    %128 = vector.broadcast %cst_55 : f32 to vector<8x1xf32>
    %129 = arith.addf %125, %128 : vector<8x1xf32>
    %130 = math.rsqrt %129 : vector<8x1xf32>
    %131 = vector.broadcast %130 : vector<8x1xf32> to vector<8x32xf32>
    %132 = arith.mulf %127, %131 : vector<8x32xf32>
    %133 = vector.broadcast %109 : vector<1x32xf32> to vector<8x32xf32>
    %134 = arith.mulf %132, %133 : vector<8x32xf32>
    %135 = vector.broadcast %110 : vector<1x32xf32> to vector<8x32xf32>
    %136 = arith.addf %134, %135 : vector<8x32xf32>
    %137 = arith.truncf %136 : vector<8x32xf32> to vector<8x32xbf16>
    %cst_56 = arith.constant dense<0.000000e+00> : vector<8x32xf32>
    %138 = tpu.matmul %137, %111, %cst_56 {dimension_numbers = #tpu.dot_dimension_numbers<[1], [0], [0], [1], [0, 0, 1, 1], [], []>} : vector<8x32xbf16>, vector<32x32xbf16>, vector<8x32xf32> -> vector<8x32xf32>
    %139 = vector.broadcast %112 : vector<1x32xf32> to vector<8x32xf32>
    %140 = arith.addf %138, %139 : vector<8x32xf32>
    %c0_57 = arith.constant 0 : index
    %c0_58 = arith.constant 0 : index
    %c0_59 = arith.constant 0 : index
    %141 = vector.load %arg21[%c0_57, %c0_58, %c0_59] : memref<1x8x32xf32, #tpu.memory_space<vmem>>, vector<1x8x32xf32>
    %142 = vector.shape_cast %141 : vector<1x8x32xf32> to vector<8x32xf32>
    %143 = vector.shape_cast %140 : vector<8x32xf32> to vector<1x8x32xf32>
    tpu.vector_store %arg21[%c0_57, %c0_58, %c0_59], %143 {strides = array<i32>} : memref<1x8x32xf32, #tpu.memory_space<vmem>>, vector<1x8x32xf32>,
    return
  }
  func.func @transform_0(%arg0: i32, %arg1: i32) -> (i32, i32, i32) {
    %c0_i32 = arith.constant 0 : i32
    %c0_i32_0 = arith.constant 0 : i32
    return %arg0, %arg1, %c0_i32 : i32, i32, i32
  }
  func.func @transform_1(%arg0: i32, %arg1: i32) -> (i32, i32, i32) {
    %c0_i32 = arith.constant 0 : i32
    %c0_i32_0 = arith.constant 0 : i32
    %c0_i32_1 = arith.constant 0 : i32
    return %arg0, %c0_i32, %c0_i32_0 : i32, i32, i32
  }
  func.func @transform_2(%arg0: i32, %arg1: i32) -> (i32, i32, i32) {
    %c0_i32 = arith.constant 0 : i32
    %c0_i32_0 = arith.constant 0 : i32
    %c0_i32_1 = arith.constant 0 : i32
    return %arg0, %c0_i32, %c0_i32_0 : i32, i32, i32
  }
  func.func @transform_3(%arg0: i32, %arg1: i32) -> (i32, i32) {
    %c0_i32 = arith.constant 0 : i32
    %c0_i32_0 = arith.constant 0 : i32
    %c0_i32_1 = arith.constant 0 : i32
    return %c0_i32, %c0_i32_0 : i32, i32
  }
  func.func @transform_4(%arg0: i32, %arg1: i32) -> (i32, i32) {
    %c0_i32 = arith.constant 0 : i32
    %c0_i32_0 = arith.constant 0 : i32
    %c0_i32_1 = arith.constant 0 : i32
    return %c0_i32, %c0_i32_0 : i32, i32
  }
  func.func @transform_5(%arg0: i32, %arg1: i32) -> (i32, i32) {
    %c0_i32 = arith.constant 0 : i32
    %c0_i32_0 = arith.constant 0 : i32
    %c0_i32_1 = arith.constant 0 : i32
    return %c0_i32, %c0_i32_0 : i32, i32
  }
  func.func @transform_6(%arg0: i32, %arg1: i32) -> (i32, i32) {
    %c0_i32 = arith.constant 0 : i32
    %c0_i32_0 = arith.constant 0 : i32
    %c0_i32_1 = arith.constant 0 : i32
    return %c0_i32, %c0_i32_0 : i32, i32
  }
  func.func @transform_7(%arg0: i32, %arg1: i32) -> (i32, i32) {
    %c0_i32 = arith.constant 0 : i32
    %c0_i32_0 = arith.constant 0 : i32
    %c0_i32_1 = arith.constant 0 : i32
    return %c0_i32, %c0_i32_0 : i32, i32
  }
  func.func @transform_8(%arg0: i32, %arg1: i32) -> (i32, i32) {
    %c0_i32 = arith.constant 0 : i32
    %c0_i32_0 = arith.constant 0 : i32
    %c0_i32_1 = arith.constant 0 : i32
    return %c0_i32, %c0_i32_0 : i32, i32
  }
  func.func @transform_9(%arg0: i32, %arg1: i32) -> (i32, i32) {
    %c0_i32 = arith.constant 0 : i32
    %c0_i32_0 = arith.constant 0 : i32
    %c0_i32_1 = arith.constant 0 : i32
    return %c0_i32, %c0_i32_0 : i32, i32
  }
  func.func @transform_10(%arg0: i32, %arg1: i32) -> (i32, i32) {
    %c0_i32 = arith.constant 0 : i32
    %c0_i32_0 = arith.constant 0 : i32
    %c0_i32_1 = arith.constant 0 : i32
    return %c0_i32, %c0_i32_0 : i32, i32
  }
  func.func @transform_11(%arg0: i32, %arg1: i32) -> (i32, i32) {
    %c0_i32 = arith.constant 0 : i32
    %c0_i32_0 = arith.constant 0 : i32
    %c0_i32_1 = arith.constant 0 : i32
    return %c0_i32, %c0_i32_0 : i32, i32
  }
  func.func @transform_12(%arg0: i32, %arg1: i32) -> (i32, i32) {
    %c0_i32 = arith.constant 0 : i32
    %c0_i32_0 = arith.constant 0 : i32
    %c0_i32_1 = arith.constant 0 : i32
    return %c0_i32, %c0_i32_0 : i32, i32
  }
  func.func @transform_13(%arg0: i32, %arg1: i32) -> (i32, i32) {
    %c0_i32 = arith.constant 0 : i32
    %c0_i32_0 = arith.constant 0 : i32
    %c0_i32_1 = arith.constant 0 : i32
    return %c0_i32, %c0_i32_0 : i32, i32
  }
  func.func @transform_14(%arg0: i32, %arg1: i32) -> (i32, i32) {
    %c0_i32 = arith.constant 0 : i32
    %c0_i32_0 = arith.constant 0 : i32
    %c0_i32_1 = arith.constant 0 : i32
    return %c0_i32, %c0_i32_0 : i32, i32
  }
  func.func @transform_15(%arg0: i32, %arg1: i32) -> (i32, i32) {
    %c0_i32 = arith.constant 0 : i32
    %c0_i32_0 = arith.constant 0 : i32
    %c0_i32_1 = arith.constant 0 : i32
    return %c0_i32, %c0_i32_0 : i32, i32
  }
  func.func @transform_16(%arg0: i32, %arg1: i32) -> (i32, i32) {
    %c0_i32 = arith.constant 0 : i32
    %c0_i32_0 = arith.constant 0 : i32
    %c0_i32_1 = arith.constant 0 : i32
    return %c0_i32, %c0_i32_0 : i32, i32
  }
  func.func @transform_17(%arg0: i32, %arg1: i32) -> (i32, i32) {
    %c0_i32 = arith.constant 0 : i32
    %c0_i32_0 = arith.constant 0 : i32
    %c0_i32_1 = arith.constant 0 : i32
    return %c0_i32, %c0_i32_0 : i32, i32
  }
  func.func @transform_18(%arg0: i32, %arg1: i32) -> (i32, i32) {
    %c0_i32 = arith.constant 0 : i32
    %c0_i32_0 = arith.constant 0 : i32
    %c0_i32_1 = arith.constant 0 : i32
    return %c0_i32, %c0_i32_0 : i32, i32
  }
  func.func @transform_19(%arg0: i32, %arg1: i32) -> (i32, i32, i32) {
    %c0_i32 = arith.constant 0 : i32
    %c0_i32_0 = arith.constant 0 : i32
    return %arg0, %arg1, %c0_i32 : i32, i32, i32
  }
}

</mosaic_0001>

<llo_original>
// kernel: tpu_custom_call.1
$region0: #{tpu_custom_call.1}
  #allocation0 [shape = 'u32[]', space=smem, size = 0x4, offset = 0x4, fixed_abs, tag = 'smem constant byte address 0x4 - core index']
  #allocation1 [shape = 'u32[144,128]{1,0:T(1,128)}', space=vmem, size = 0x12000, scoped, tag = 'internal scratch']
  #allocation2 [shape = 'bf16[16,32]{1,0:T(16,128)(2,1)}', space=vmem, size = 0x1000, scoped, tag = 'scratch operand']
  #allocation3 [shape = 'bf16[16,32]{1,0:T(16,128)(2,1)}', space=vmem, size = 0x1000, scoped, tag = 'scratch operand']
  #allocation4 [shape = 'f32[8,32]{1,0:T(8,128)}', space=vmem, size = 0x1000, scoped, tag = 'scratch operand']
  %s0 = inlined_call_operand.hbm [shape: f32[2,8,32], index: 0, kind: input, shape index: {}]
  %s1 = inlined_call_operand.hbm [shape: f32[2,16,32], index: 1, kind: input, shape index: {}]
  %s2 = inlined_call_operand.hbm [shape: f32[2,16,32], index: 2, kind: input, shape index: {}]
  %s3 = inlined_call_operand.hbm [shape: f32[1,32], index: 3, kind: input, shape index: {}]
  %s4 = inlined_call_operand.hbm [shape: f32[1,32], index: 4, kind: input, shape index: {}]
  %s5 = inlined_call_operand.vmem [shape: bf16[32,32], index: 5, kind: input, shape index: {}]
  %s6 = inlined_call_operand.hbm [shape: f32[1,32], index: 6, kind: input, shape index: {}]
  %s7 = inlined_call_operand.hbm [shape: f32[1,32], index: 7, kind: input, shape index: {}]
  %s8 = inlined_call_operand.hbm [shape: f32[1,32], index: 8, kind: input, shape index: {}]
  %s9 = inlined_call_operand.vmem [shape: bf16[32,32], index: 9, kind: input, shape index: {}]
  %s10 = inlined_call_operand.hbm [shape: f32[1,32], index: 10, kind: input, shape index: {}]
  %s11 = inlined_call_operand.hbm [shape: f32[1,32], index: 11, kind: input, shape index: {}]
  %s12 = inlined_call_operand.hbm [shape: f32[1,32], index: 12, kind: input, shape index: {}]
  %s13 = inlined_call_operand.vmem [shape: bf16[32,32], index: 13, kind: input, shape index: {}]
  %s14 = inlined_call_operand.hbm [shape: f32[1,32], index: 14, kind: input, shape index: {}]
  %s15 = inlined_call_operand.hbm [shape: f32[1,32], index: 15, kind: input, shape index: {}]
  %s16 = inlined_call_operand.hbm [shape: f32[1,32], index: 16, kind: input, shape index: {}]
  %s17 = inlined_call_operand.vmem [shape: bf16[32,32], index: 17, kind: input, shape index: {}]
  %s18 = inlined_call_operand.vmem [shape: f32[1,32], index: 18, kind: input, shape index: {}]
  %s19 = inlined_call_operand.hbm [shape: f32[2,8,32], index: 19, kind: output, shape index: {}]
  %s20 = sld [smem:[#allocation0]]
  $region169: #{tpu_custom_call.1} parent=0
    _
  %s22 = ssub.s32 1, %s20
  %s23 = scalar_select 0, %s22, %s20
  $region1: #{tpu_custom_call.1} parent=0
    #allocation5 [shape = 'u8[8192]{0}', space=vmem, size = 0x2000, scoped, tag = 'input window, operand 0']
    #allocation6 [shape = 's32[2]{0}', space=sflag, size = 0x8, scoped, tag = 'scoped memory for tpu_custom_call.1']
    #allocation7 [shape = 's32[2]{0}', space=sflag, size = 0x8, scoped, tag = 'scoped memory for tpu_custom_call.1']
    #allocation8 [shape = 'u8[16384]{0}', space=vmem, size = 0x4000, scoped, tag = 'input window, operand 1']
    #allocation9 [shape = 's32[2]{0}', space=sflag, size = 0x8, scoped, tag = 'scoped memory for tpu_custom_call.1']
    #allocation10 [shape = 'u8[16384]{0}', space=vmem, size = 0x4000, scoped, tag = 'input window, operand 2']
    #allocation11 [shape = 'u8[512]{0}', space=vmem, size = 0x400, scoped, tag = 'input window, operand 3, single buffered']
    #allocation12 [shape = 's32[1]{0}', space=sflag, size = 0x4, scoped, tag = 'scoped memory for tpu_custom_call.1']
    #allocation13 [shape = 'u8[512]{0}', space=vmem, size = 0x400, scoped, tag = 'input window, operand 4, single buffered']
    #allocation14 [shape = 'u8[512]{0}', space=vmem, size = 0x400, scoped, tag = 'input window, operand 6, single buffered']
    #allocation15 [shape = 's32[1]{0}', space=sflag, size = 0x4, scoped, tag = 'scoped memory for tpu_custom_call.1']
    #allocation16 [shape = 'u8[512]{0}', space=vmem, size = 0x400, scoped, tag = 'input window, operand 7, single buffered']
    #allocation17 [shape = 'u8[512]{0}', space=vmem, size = 0x400, scoped, tag = 'input window, operand 8, single buffered']
    #allocation18 [shape = 's32[1]{0}', space=sflag, size = 0x4, scoped, tag = 'scoped memory for tpu_custom_call.1']
    #allocation19 [shape = 'u8[512]{0}', space=vmem, size = 0x400, scoped, tag = 'input window, operand 10, single buffered']
    #allocation20 [shape = 'u8[512]{0}', space=vmem, size = 0x400, scoped, tag = 'input window, operand 11, single buffered']
    #allocation21 [shape = 's32[1]{0}', space=sflag, size = 0x4, scoped, tag = 'scoped memory for tpu_custom_call.1']
    #allocation22 [shape = 'u8[512]{0}', space=vmem, size = 0x400, scoped, tag = 'input window, operand 12, single buffered']
    #allocation23 [shape = 'u8[512]{0}', space=vmem, size = 0x400, scoped, tag = 'input window, operand 14, single buffered']
    #allocation24 [shape = 's32[1]{0}', space=sflag, size = 0x4, scoped, tag = 'scoped memory for tpu_custom_call.1']
    #allocation25 [shape = 'u8[512]{0}', space=vmem, size = 0x400, scoped, tag = 'input window, operand 15, single buffered']
    #allocation26 [shape = 'u8[512]{0}', space=vmem, size = 0x400, scoped, tag = 'input window, operand 16, single buffered']
    #allocation27 [shape = 's32[1]{0}', space=sflag, size = 0x4, scoped, tag = 'scoped memory for tpu_custom_call.1']
    #allocation28 [shape = 'u8[8192]{0}', space=vmem, size = 0x2000, scoped, tag = 'output window, operand 0']
    %24 = vsyncpa [#allocation6], 0
    %s25 = scalar_lea.sflag [#allocation6], 1
    %26 = vsyncpa %s25, 0
    %27 = vsyncpa [#allocation9], 0
    %s28 = scalar_lea.sflag [#allocation9], 1
    %29 = vsyncpa %s28, 0
    %30 = vsyncpa [#allocation12], 0
    %31 = vsyncpa [#allocation15], 0
    %32 = vsyncpa [#allocation18], 0
    %33 = vsyncpa [#allocation21], 0
    %34 = vsyncpa [#allocation24], 0
    %35 = vsyncpa [#allocation27], 0
    %36 = vsyncpa [#allocation7], 0
    %s37 = scalar_lea.sflag [#allocation7], 1
    %38 = vsyncpa %s37, 0
    loop: start=0, step=1, limit=4
    $region2: #{tpu_custom_call.1} parent=1 // loop_pre_header
      _
    $region3: #{tpu_custom_call.1} parent=1 // loop_header
      %s40 = sphi 0, %s44
      %p41 = scmp.ge.s32.totalorder %s40, 4
      %s47 = sphi 0, %s59
      %s48 = sphi 0, %s55
      %s49 = sphi 0, %s47
      %s50 = sphi 0, %s48
      %s51 = sphi 0, %s49
      %s52 = sphi 0, %s50
      %s64 = sphi 0, %s66
      %s67 = sphi 0, %s64
      %s68 = sphi 0, %s67
      %s84 = sphi 0, %s68
      %s90 = sphi 0, %s92
      %s93 = sphi 0, %s90
      %s94 = sphi 0, %s93
      %s110 = sphi 0, %s94
      %s116 = sphi 0, %s118
      %s119 = sphi 0, %s116
      %s120 = sphi 0, %s119
      %s136 = sphi 0, %s120
      %s140 = sphi 0, %s140
      %s142 = sphi 0, %s140
      %s143 = sphi 0, %s142
      %s157 = sphi 0, %s143
      %s161 = sphi 0, %s161
      %s163 = sphi 0, %s161
      %s164 = sphi 0, %s163
      %s178 = sphi 0, %s164
      %s182 = sphi 0, %s182
      %s184 = sphi 0, %s182
      %s185 = sphi 0, %s184
      %s199 = sphi 0, %s185
      %s203 = sphi 0, %s203
      %s205 = sphi 0, %s203
      %s206 = sphi 0, %s205
      %s220 = sphi 0, %s206
      %s224 = sphi 0, %s224
      %s226 = sphi 0, %s224
      %s227 = sphi 0, %s226
      %s241 = sphi 0, %s227
      %s245 = sphi 0, %s245
      %s247 = sphi 0, %s245
      %s248 = sphi 0, %s247
      %s262 = sphi 0, %s248
      %s266 = sphi 0, %s266
      %s268 = sphi 0, %s266
      %s269 = sphi 0, %s268
      %s283 = sphi 0, %s269
      %s287 = sphi 0, %s287
      %s289 = sphi 0, %s287
      %s290 = sphi 0, %s289
      %s304 = sphi 0, %s290
      %s308 = sphi 0, %s308
      %s310 = sphi 0, %s308
      %s311 = sphi 0, %s310
      %s325 = sphi 0, %s311
      %s329 = sphi 0, %s329
      %s331 = sphi 0, %s329
      %s332 = sphi 0, %s331
      %s346 = sphi 0, %s332
      %s350 = sphi 0, %s350
      %s352 = sphi 0, %s350
      %s353 = sphi 0, %s352
      %s367 = sphi 0, %s353
      %s371 = sphi 0, %s371
      %s373 = sphi 0, %s371
      %s374 = sphi 0, %s373
      %s388 = sphi 0, %s374
      %s392 = sphi 0, %s392
      %s394 = sphi 0, %s392
      %s395 = sphi 0, %s394
      %s409 = sphi 0, %s395
      %s413 = sphi 0, %s413
      %s415 = sphi 0, %s413
      %s416 = sphi 0, %s415
      %s430 = sphi 0, %s416
      %s434 = sphi 0, %s434
      %s436 = sphi 0, %s434
      %s437 = sphi 0, %s436
      %s451 = sphi 0, %s437
      %s455 = sphi 0, %s455
      %s457 = sphi 0, %s455
      %s458 = sphi 0, %s457
      %s472 = sphi 0, %s458
      %s480 = sphi 0, %s482
      %s483 = sphi 0, %s480
      %s484 = sphi 0, %s483
      %s500 = sphi 0, %s484
    $region4: #{tpu_custom_call.1} parent=1 // loop_header_branch
      %43 = sbr.rel (%p41) target = $region8
    $region5: #{tpu_custom_call.1} parent=1 // loop_body
      %s45 = ssub.s32 %s40, 1
      %s46 = ssub.s32 %s40, 2
      %s53 = sadd.s32 1, %s48
      %p54 = scmp.ge.s32.totalorder %s53, 1
      %s55 = scalar_select %p54, 0, %s53
      %s56 = sadd.s32 1, %s47
      %s57 = scalar_select %p54, %s56, %s47
      %p58 = scmp.ge.s32.totalorder %s57, 2
      %s59 = scalar_select %p58, 0, %s57
      %s60 = ssub.s32 %s47, %s59
      %s61 = ssub.s32 %s48, %s55
      %s62 = sor.u32 %s60, %s61
      %p63 = scmp.eq.s32.totalorder %s62, 0
      %s65 = sadd.s32 %s64, 1
      %s66 = scalar_select %p63, %s64, %s65
      %p69 = pneg %p63
      %p70 = scmp.eq.s32.totalorder %s40, 1
      %p71 = por %p69, %p70
      %p72 = scmp.ne.s32.totalorder %s64, %s67
      %p73 = scmp.eq.s32.totalorder %s40, 0
      %p74 = por %p72, %p73
      %p75 = scmp.ne.s32.totalorder %s64, %s67
      %p76 = scmp.eq.s32.totalorder %s45, 1
      %p77 = por %p75, %p76
      %p78 = scmp.ne.s32.totalorder %s67, %s68
      %p79 = scmp.eq.s32.totalorder %s45, 0
      %p80 = por %p78, %p79
      %p81 = scmp.ne.s32.totalorder %s67, %s68
      %p82 = scmp.eq.s32.totalorder %s46, 1
      %p83 = por %p81, %p82
      %p85 = scmp.ne.s32.totalorder %s68, %s84
      %p86 = scmp.eq.s32.totalorder %s46, 0
      %p87 = por %p85, %p86
      %s88 = ssub.s32 %s47, %s59
      %p89 = scmp.eq.s32.totalorder %s88, 0
      %s91 = sadd.s32 %s90, 1
      %s92 = scalar_select %p89, %s90, %s91
      %p95 = pneg %p89
      %p96 = scmp.eq.s32.totalorder %s40, 1
      %p97 = por %p95, %p96
      %p98 = scmp.ne.s32.totalorder %s90, %s93
      %p99 = scmp.eq.s32.totalorder %s40, 0
      %p100 = por %p98, %p99
      %p101 = scmp.ne.s32.totalorder %s90, %s93
      %p102 = scmp.eq.s32.totalorder %s45, 1
      %p103 = por %p101, %p102
      %p104 = scmp.ne.s32.totalorder %s93, %s94
      %p105 = scmp.eq.s32.totalorder %s45, 0
      %p106 = por %p104, %p105
      %p107 = scmp.ne.s32.totalorder %s93, %s94
      %p108 = scmp.eq.s32.totalorder %s46, 1
      %p109 = por %p107, %p108
      %p111 = scmp.ne.s32.totalorder %s94, %s110
      %p112 = scmp.eq.s32.totalorder %s46, 0
      %p113 = por %p111, %p112
      %s114 = ssub.s32 %s47, %s59
      %p115 = scmp.eq.s32.totalorder %s114, 0
      %s117 = sadd.s32 %s116, 1
      %s118 = scalar_select %p115, %s116, %s117
      %p121 = pneg %p115
      %p122 = scmp.eq.s32.totalorder %s40, 1
      %p123 = por %p121, %p122
      %p124 = scmp.ne.s32.totalorder %s116, %s119
      %p125 = scmp.eq.s32.totalorder %s40, 0
      %p126 = por %p124, %p125
      %p127 = scmp.ne.s32.totalorder %s116, %s119
      %p128 = scmp.eq.s32.totalorder %s45, 1
      %p129 = por %p127, %p128
      %p130 = scmp.ne.s32.totalorder %s119, %s120
      %p131 = scmp.eq.s32.totalorder %s45, 0
      %p132 = por %p130, %p131
      %p133 = scmp.ne.s32.totalorder %s119, %s120
      %p134 = scmp.eq.s32.totalorder %s46, 1
      %p135 = por %p133, %p134
      %p137 = scmp.ne.s32.totalorder %s120, %s136
      %p138 = scmp.eq.s32.totalorder %s46, 0
      %p139 = por %p137, %p138
      %s141 = sadd.s32 %s140, 1
      %p144 = scmp.eq.s32.totalorder %s40, 1
      %p145 = scmp.ne.s32.totalorder %s140, %s142
      %p146 = scmp.eq.s32.totalorder %s40, 0
      %p147 = por %p145, %p146
      %p148 = scmp.ne.s32.totalorder %s140, %s142
      %p149 = scmp.eq.s32.totalorder %s45, 1
      %p150 = por %p148, %p149
      %p151 = scmp.ne.s32.totalorder %s142, %s143
      %p152 = scmp.eq.s32.totalorder %s45, 0
      %p153 = por %p151, %p152
      %p154 = scmp.ne.s32.totalorder %s142, %s143
      %p155 = scmp.eq.s32.totalorder %s46, 1
      %p156 = por %p154, %p155
      %p158 = scmp.ne.s32.totalorder %s143, %s157
      %p159 = scmp.eq.s32.totalorder %s46, 0
      %p160 = por %p158, %p159
      %s162 = sadd.s32 %s161, 1
      %p165 = scmp.eq.s32.totalorder %s40, 1
      %p166 = scmp.ne.s32.totalorder %s161, %s163
      %p167 = scmp.eq.s32.totalorder %s40, 0
      %p168 = por %p166, %p167
      %p169 = scmp.ne.s32.totalorder %s161, %s163
      %p170 = scmp.eq.s32.totalorder %s45, 1
      %p171 = por %p169, %p170
      %p172 = scmp.ne.s32.totalorder %s163, %s164
      %p173 = scmp.eq.s32.totalorder %s45, 0
      %p174 = por %p172, %p173
      %p175 = scmp.ne.s32.totalorder %s163, %s164
      %p176 = scmp.eq.s32.totalorder %s46, 1
      %p177 = por %p175, %p176
      %p179 = scmp.ne.s32.totalorder %s164, %s178
      %p180 = scmp.eq.s32.totalorder %s46, 0
      %p181 = por %p179, %p180
      %s183 = sadd.s32 %s182, 1
      %p186 = scmp.eq.s32.totalorder %s40, 1
      %p187 = scmp.ne.s32.totalorder %s182, %s184
      %p188 = scmp.eq.s32.totalorder %s40, 0
      %p189 = por %p187, %p188
      %p190 = scmp.ne.s32.totalorder %s182, %s184
      %p191 = scmp.eq.s32.totalorder %s45, 1
      %p192 = por %p190, %p191
      %p193 = scmp.ne.s32.totalorder %s184, %s185
      %p194 = scmp.eq.s32.totalorder %s45, 0
      %p195 = por %p193, %p194
      %p196 = scmp.ne.s32.totalorder %s184, %s185
      %p197 = scmp.eq.s32.totalorder %s46, 1
      %p198 = por %p196, %p197
      %p200 = scmp.ne.s32.totalorder %s185, %s199
      %p201 = scmp.eq.s32.totalorder %s46, 0
      %p202 = por %p200, %p201
      %s204 = sadd.s32 %s203, 1
      %p207 = scmp.eq.s32.totalorder %s40, 1
      %p208 = scmp.ne.s32.totalorder %s203, %s205
      %p209 = scmp.eq.s32.totalorder %s40, 0
      %p210 = por %p208, %p209
      %p211 = scmp.ne.s32.totalorder %s203, %s205
      %p212 = scmp.eq.s32.totalorder %s45, 1
      %p213 = por %p211, %p212
      %p214 = scmp.ne.s32.totalorder %s205, %s206
      %p215 = scmp.eq.s32.totalorder %s45, 0
      %p216 = por %p214, %p215
      %p217 = scmp.ne.s32.totalorder %s205, %s206
      %p218 = scmp.eq.s32.totalorder %s46, 1
      %p219 = por %p217, %p218
      %p221 = scmp.ne.s32.totalorder %s206, %s220
      %p222 = scmp.eq.s32.totalorder %s46, 0
      %p223 = por %p221, %p222
      %s225 = sadd.s32 %s224, 1
      %p228 = scmp.eq.s32.totalorder %s40, 1
      %p229 = scmp.ne.s32.totalorder %s224, %s226
      %p230 = scmp.eq.s32.totalorder %s40, 0
      %p231 = por %p229, %p230
      %p232 = scmp.ne.s32.totalorder %s224, %s226
      %p233 = scmp.eq.s32.totalorder %s45, 1
      %p234 = por %p232, %p233
      %p235 = scmp.ne.s32.totalorder %s226, %s227
      %p236 = scmp.eq.s32.totalorder %s45, 0
      %p237 = por %p235, %p236
      %p238 = scmp.ne.s32.totalorder %s226, %s227
      %p239 = scmp.eq.s32.totalorder %s46, 1
      %p240 = por %p238, %p239
      %p242 = scmp.ne.s32.totalorder %s227, %s241
      %p243 = scmp.eq.s32.totalorder %s46, 0
      %p244 = por %p242, %p243
      %s246 = sadd.s32 %s245, 1
      %p249 = scmp.eq.s32.totalorder %s40, 1
      %p250 = scmp.ne.s32.totalorder %s245, %s247
      %p251 = scmp.eq.s32.totalorder %s40, 0
      %p252 = por %p250, %p251
      %p253 = scmp.ne.s32.totalorder %s245, %s247
      %p254 = scmp.eq.s32.totalorder %s45, 1
      %p255 = por %p253, %p254
      %p256 = scmp.ne.s32.totalorder %s247, %s248
      %p257 = scmp.eq.s32.totalorder %s45, 0
      %p258 = por %p256, %p257
      %p259 = scmp.ne.s32.totalorder %s247, %s248
      %p260 = scmp.eq.s32.totalorder %s46, 1
      %p261 = por %p259, %p260
      %p263 = scmp.ne.s32.totalorder %s248, %s262
      %p264 = scmp.eq.s32.totalorder %s46, 0
      %p265 = por %p263, %p264
      %s267 = sadd.s32 %s266, 1
      %p270 = scmp.eq.s32.totalorder %s40, 1
      %p271 = scmp.ne.s32.totalorder %s266, %s268
      %p272 = scmp.eq.s32.totalorder %s40, 0
      %p273 = por %p271, %p272
      %p274 = scmp.ne.s32.totalorder %s266, %s268
      %p275 = scmp.eq.s32.totalorder %s45, 1
      %p276 = por %p274, %p275
      %p277 = scmp.ne.s32.totalorder %s268, %s269
      %p278 = scmp.eq.s32.totalorder %s45, 0
      %p279 = por %p277, %p278
      %p280 = scmp.ne.s32.totalorder %s268, %s269
      %p281 = scmp.eq.s32.totalorder %s46, 1
      %p282 = por %p280, %p281
      %p284 = scmp.ne.s32.totalorder %s269, %s283
      %p285 = scmp.eq.s32.totalorder %s46, 0
      %p286 = por %p284, %p285
      %s288 = sadd.s32 %s287, 1
      %p291 = scmp.eq.s32.totalorder %s40, 1
      %p292 = scmp.ne.s32.totalorder %s287, %s289
      %p293 = scmp.eq.s32.totalorder %s40, 0
      %p294 = por %p292, %p293
      %p295 = scmp.ne.s32.totalorder %s287, %s289
      %p296 = scmp.eq.s32.totalorder %s45, 1
      %p297 = por %p295, %p296
      %p298 = scmp.ne.s32.totalorder %s289, %s290
      %p299 = scmp.eq.s32.totalorder %s45, 0
      %p300 = por %p298, %p299
      %p301 = scmp.ne.s32.totalorder %s289, %s290
      %p302 = scmp.eq.s32.totalorder %s46, 1
      %p303 = por %p301, %p302
      %p305 = scmp.ne.s32.totalorder %s290, %s304
      %p306 = scmp.eq.s32.totalorder %s46, 0
      %p307 = por %p305, %p306
      %s309 = sadd.s32 %s308, 1
      %p312 = scmp.eq.s32.totalorder %s40, 1
      %p313 = scmp.ne.s32.totalorder %s308, %s310
      %p314 = scmp.eq.s32.totalorder %s40, 0
      %p315 = por %p313, %p314
      %p316 = scmp.ne.s32.totalorder %s308, %s310
      %p317 = scmp.eq.s32.totalorder %s45, 1
      %p318 = por %p316, %p317
      %p319 = scmp.ne.s32.totalorder %s310, %s311
      %p320 = scmp.eq.s32.totalorder %s45, 0
      %p321 = por %p319, %p320
      %p322 = scmp.ne.s32.totalorder %s310, %s311
      %p323 = scmp.eq.s32.totalorder %s46, 1
      %p324 = por %p322, %p323
      %p326 = scmp.ne.s32.totalorder %s311, %s325
      %p327 = scmp.eq.s32.totalorder %s46, 0
      %p328 = por %p326, %p327
      %s330 = sadd.s32 %s329, 1
      %p333 = scmp.eq.s32.totalorder %s40, 1
      %p334 = scmp.ne.s32.totalorder %s329, %s331
      %p335 = scmp.eq.s32.totalorder %s40, 0
      %p336 = por %p334, %p335
      %p337 = scmp.ne.s32.totalorder %s329, %s331
      %p338 = scmp.eq.s32.totalorder %s45, 1
      %p339 = por %p337, %p338
      %p340 = scmp.ne.s32.totalorder %s331, %s332
      %p341 = scmp.eq.s32.totalorder %s45, 0
      %p342 = por %p340, %p341
      %p343 = scmp.ne.s32.totalorder %s331, %s332
      %p344 = scmp.eq.s32.totalorder %s46, 1
      %p345 = por %p343, %p344
      %p347 = scmp.ne.s32.totalorder %s332, %s346
      %p348 = scmp.eq.s32.totalorder %s46, 0
      %p349 = por %p347, %p348
      %s351 = sadd.s32 %s350, 1
      %p354 = scmp.eq.s32.totalorder %s40, 1
      %p355 = scmp.ne.s32.totalorder %s350, %s352
      %p356 = scmp.eq.s32.totalorder %s40, 0
      %p357 = por %p355, %p356
      %p358 = scmp.ne.s32.totalorder %s350, %s352
      %p359 = scmp.eq.s32.totalorder %s45, 1
      %p360 = por %p358, %p359
      %p361 = scmp.ne.s32.totalorder %s352, %s353
      %p362 = scmp.eq.s32.totalorder %s45, 0
      %p363 = por %p361, %p362
      %p364 = scmp.ne.s32.totalorder %s352, %s353
      %p365 = scmp.eq.s32.totalorder %s46, 1
      %p366 = por %p364, %p365
      %p368 = scmp.ne.s32.totalorder %s353, %s367
      %p369 = scmp.eq.s32.totalorder %s46, 0
      %p370 = por %p368, %p369
      %s372 = sadd.s32 %s371, 1
      %p375 = scmp.eq.s32.totalorder %s40, 1
      %p376 = scmp.ne.s32.totalorder %s371, %s373
      %p377 = scmp.eq.s32.totalorder %s40, 0
      %p378 = por %p376, %p377
      %p379 = scmp.ne.s32.totalorder %s371, %s373
      %p380 = scmp.eq.s32.totalorder %s45, 1
      %p381 = por %p379, %p380
      %p382 = scmp.ne.s32.totalorder %s373, %s374
      %p383 = scmp.eq.s32.totalorder %s45, 0
      %p384 = por %p382, %p383
      %p385 = scmp.ne.s32.totalorder %s373, %s374
      %p386 = scmp.eq.s32.totalorder %s46, 1
      %p387 = por %p385, %p386
      %p389 = scmp.ne.s32.totalorder %s374, %s388
      %p390 = scmp.eq.s32.totalorder %s46, 0
      %p391 = por %p389, %p390
      %s393 = sadd.s32 %s392, 1
      %p396 = scmp.eq.s32.totalorder %s40, 1
      %p397 = scmp.ne.s32.totalorder %s392, %s394
      %p398 = scmp.eq.s32.totalorder %s40, 0
      %p399 = por %p397, %p398
      %p400 = scmp.ne.s32.totalorder %s392, %s394
      %p401 = scmp.eq.s32.totalorder %s45, 1
      %p402 = por %p400, %p401
      %p403 = scmp.ne.s32.totalorder %s394, %s395
      %p404 = scmp.eq.s32.totalorder %s45, 0
      %p405 = por %p403, %p404
      %p406 = scmp.ne.s32.totalorder %s394, %s395
      %p407 = scmp.eq.s32.totalorder %s46, 1
      %p408 = por %p406, %p407
      %p410 = scmp.ne.s32.totalorder %s395, %s409
      %p411 = scmp.eq.s32.totalorder %s46, 0
      %p412 = por %p410, %p411
      %s414 = sadd.s32 %s413, 1
      %p417 = scmp.eq.s32.totalorder %s40, 1
      %p418 = scmp.ne.s32.totalorder %s413, %s415
      %p419 = scmp.eq.s32.totalorder %s40, 0
      %p420 = por %p418, %p419
      %p421 = scmp.ne.s32.totalorder %s413, %s415
      %p422 = scmp.eq.s32.totalorder %s45, 1
      %p423 = por %p421, %p422
      %p424 = scmp.ne.s32.totalorder %s415, %s416
      %p425 = scmp.eq.s32.totalorder %s45, 0
      %p426 = por %p424, %p425
      %p427 = scmp.ne.s32.totalorder %s415, %s416
      %p428 = scmp.eq.s32.totalorder %s46, 1
      %p429 = por %p427, %p428
      %p431 = scmp.ne.s32.totalorder %s416, %s430
      %p432 = scmp.eq.s32.totalorder %s46, 0
      %p433 = por %p431, %p432
      %s435 = sadd.s32 %s434, 1
      %p438 = scmp.eq.s32.totalorder %s40, 1
      %p439 = scmp.ne.s32.totalorder %s434, %s436
      %p440 = scmp.eq.s32.totalorder %s40, 0
      %p441 = por %p439, %p440
      %p442 = scmp.ne.s32.totalorder %s434, %s436
      %p443 = scmp.eq.s32.totalorder %s45, 1
      %p444 = por %p442, %p443
      %p445 = scmp.ne.s32.totalorder %s436, %s437
      %p446 = scmp.eq.s32.totalorder %s45, 0
      %p447 = por %p445, %p446
      %p448 = scmp.ne.s32.totalorder %s436, %s437
      %p449 = scmp.eq.s32.totalorder %s46, 1
      %p450 = por %p448, %p449
      %p452 = scmp.ne.s32.totalorder %s437, %s451
      %p453 = scmp.eq.s32.totalorder %s46, 0
      %p454 = por %p452, %p453
      %s456 = sadd.s32 %s455, 1
      %p459 = scmp.eq.s32.totalorder %s40, 1
      %p460 = scmp.ne.s32.totalorder %s455, %s457
      %p461 = scmp.eq.s32.totalorder %s40, 0
      %p462 = por %p460, %p461
      %p463 = scmp.ne.s32.totalorder %s455, %s457
      %p464 = scmp.eq.s32.totalorder %s45, 1
      %p465 = por %p463, %p464
      %p466 = scmp.ne.s32.totalorder %s457, %s458
      %p467 = scmp.eq.s32.totalorder %s45, 0
      %p468 = por %p466, %p467
      %p469 = scmp.ne.s32.totalorder %s457, %s458
      %p470 = scmp.eq.s32.totalorder %s46, 1
      %p471 = por %p469, %p470
      %p473 = scmp.ne.s32.totalorder %s458, %s472
      %p474 = scmp.eq.s32.totalorder %s46, 0
      %p475 = por %p473, %p474
      %s476 = ssub.s32 %s47, %s59
      %s477 = ssub.s32 %s48, %s55
      %s478 = sor.u32 %s476, %s477
      %p479 = scmp.eq.s32.totalorder %s478, 0
      %s481 = sadd.s32 %s480, 1
      %s482 = scalar_select %p479, %s480, %s481
      %p485 = pneg %p479
      %p486 = scmp.eq.s32.totalorder %s40, 1
      %p487 = por %p485, %p486
      %p488 = scmp.ne.s32.totalorder %s480, %s483
      %p489 = scmp.eq.s32.totalorder %s40, 0
      %p490 = por %p488, %p489
      %p491 = scmp.ne.s32.totalorder %s480, %s483
      %p492 = scmp.eq.s32.totalorder %s45, 1
      %p493 = por %p491, %p492
      %p494 = scmp.ne.s32.totalorder %s483, %s484
      %p495 = scmp.eq.s32.totalorder %s45, 0
      %p496 = por %p494, %p495
      %p497 = scmp.ne.s32.totalorder %s483, %s484
      %p498 = scmp.eq.s32.totalorder %s46, 1
      %p499 = por %p497, %p498
      %p501 = scmp.ne.s32.totalorder %s484, %s500
      %p502 = scmp.eq.s32.totalorder %s46, 0
      %p503 = por %p501, %p502
      %p504 = scmp.le.s32.totalorder 1, %s40
      %p505 = scmp.lt.s32.totalorder %s40, 3
      %p506 = pnand %p504, %p505
      %p507 = pneg %p506
      // Predicated region
      $region9: #{tpu_custom_call.1} parent=5 // pred_check
        _
      $region10: #{tpu_custom_call.1} parent=5 // pred_check_branch
        %509 = sbr.rel (%p506) target = $region12
      $region11: #{tpu_custom_call.1} parent=5 // pred_region
        %s510 = ssub.s32 %s40, 1
        // Predicated region
        $region13: #{tpu_custom_call.1} parent=11 // pred_check
          %p511 = pneg %p153
        $region14: #{tpu_custom_call.1} parent=11 // pred_check_branch
          %513 = sbr.rel (%p511) target = $region16
        $region15: #{tpu_custom_call.1} parent=11 // pred_region
          %s515 = ssub.s32 16, 16
          %516 = vsyncadd [#allocation12], %s515
          %s518 = sshll.u32 [#allocation11], 4
          %s519 = int_to_ptr.vmem [resolvable:$true] %s518
          %521 = dma.hbm_to_vmem [thread:$0]  %s3, 16, %s519, [#allocation12]
        $region16: #{tpu_custom_call.1} parent=11 // pred_fallthru
          _
        // Predicated region
        $region17: #{tpu_custom_call.1} parent=11 // pred_check
          %p522 = pneg %p174
        $region18: #{tpu_custom_call.1} parent=11 // pred_check_branch
          %524 = sbr.rel (%p522) target = $region20
        $region19: #{tpu_custom_call.1} parent=11 // pred_region
          %s526 = ssub.s32 16, 16
          %527 = vsyncadd [#allocation12], %s526
          %s529 = sshll.u32 [#allocation13], 4
          %s530 = int_to_ptr.vmem [resolvable:$true] %s529
          %532 = dma.hbm_to_vmem [thread:$0]  %s4, 16, %s530, [#allocation12]
        $region20: #{tpu_custom_call.1} parent=11 // pred_fallthru
          _
        // Predicated region
        $region21: #{tpu_custom_call.1} parent=11 // pred_check
          %p533 = pneg %p195
        $region22: #{tpu_custom_call.1} parent=11 // pred_check_branch
          %535 = sbr.rel (%p533) target = $region24
        $region23: #{tpu_custom_call.1} parent=11 // pred_region
          _
        $region24: #{tpu_custom_call.1} parent=11 // pred_fallthru
          _
        // Predicated region
        $region25: #{tpu_custom_call.1} parent=11 // pred_check
          %p536 = pneg %p216
        $region26: #{tpu_custom_call.1} parent=11 // pred_check_branch
          %538 = sbr.rel (%p536) target = $region28
        $region27: #{tpu_custom_call.1} parent=11 // pred_region
          %s540 = ssub.s32 16, 16
          %541 = vsyncadd [#allocation15], %s540
          %s543 = sshll.u32 [#allocation14], 4
          %s544 = int_to_ptr.vmem [resolvable:$true] %s543
          %546 = dma.hbm_to_vmem [thread:$0]  %s6, 16, %s544, [#allocation15]
        $region28: #{tpu_custom_call.1} parent=11 // pred_fallthru
          _
        // Predicated region
        $region29: #{tpu_custom_call.1} parent=11 // pred_check
          %p547 = pneg %p237
        $region30: #{tpu_custom_call.1} parent=11 // pred_check_branch
          %549 = sbr.rel (%p547) target = $region32
        $region31: #{tpu_custom_call.1} parent=11 // pred_region
          %s551 = ssub.s32 16, 16
          %552 = vsyncadd [#allocation15], %s551
          %s554 = sshll.u32 [#allocation16], 4
          %s555 = int_to_ptr.vmem [resolvable:$true] %s554
          %557 = dma.hbm_to_vmem [thread:$0]  %s7, 16, %s555, [#allocation15]
        $region32: #{tpu_custom_call.1} parent=11 // pred_fallthru
          _
        // Predicated region
        $region33: #{tpu_custom_call.1} parent=11 // pred_check
          %p558 = pneg %p258
        $region34: #{tpu_custom_call.1} parent=11 // pred_check_branch
          %560 = sbr.rel (%p558) target = $region36
        $region35: #{tpu_custom_call.1} parent=11 // pred_region
          %s562 = ssub.s32 16, 16
          %563 = vsyncadd [#allocation18], %s562
          %s565 = sshll.u32 [#allocation17], 4
          %s566 = int_to_ptr.vmem [resolvable:$true] %s565
          %568 = dma.hbm_to_vmem [thread:$0]  %s8, 16, %s566, [#allocation18]
        $region36: #{tpu_custom_call.1} parent=11 // pred_fallthru
          _
        // Predicated region
        $region37: #{tpu_custom_call.1} parent=11 // pred_check
          %p569 = pneg %p279
        $region38: #{tpu_custom_call.1} parent=11 // pred_check_branch
          %571 = sbr.rel (%p569) target = $region40
        $region39: #{tpu_custom_call.1} parent=11 // pred_region
          _
        $region40: #{tpu_custom_call.1} parent=11 // pred_fallthru
          _
        // Predicated region
        $region41: #{tpu_custom_call.1} parent=11 // pred_check
          %p572 = pneg %p300
        $region42: #{tpu_custom_call.1} parent=11 // pred_check_branch
          %574 = sbr.rel (%p572) target = $region44
        $region43: #{tpu_custom_call.1} parent=11 // pred_region
          %s576 = ssub.s32 16, 16
          %577 = vsyncadd [#allocation18], %s576
          %s579 = sshll.u32 [#allocation19], 4
          %s580 = int_to_ptr.vmem [resolvable:$true] %s579
          %582 = dma.hbm_to_vmem [thread:$0]  %s10, 16, %s580, [#allocation18]
        $region44: #{tpu_custom_call.1} parent=11 // pred_fallthru
          _
        // Predicated region
        $region45: #{tpu_custom_call.1} parent=11 // pred_check
          %p583 = pneg %p321
        $region46: #{tpu_custom_call.1} parent=11 // pred_check_branch
          %585 = sbr.rel (%p583) target = $region48
        $region47: #{tpu_custom_call.1} parent=11 // pred_region
          %s587 = ssub.s32 16, 16
          %588 = vsyncadd [#allocation21], %s587
          %s590 = sshll.u32 [#allocation20], 4
          %s591 = int_to_ptr.vmem [resolvable:$true] %s590
          %593 = dma.hbm_to_vmem [thread:$0]  %s11, 16, %s591, [#allocation21]
        $region48: #{tpu_custom_call.1} parent=11 // pred_fallthru
          _
        // Predicated region
        $region49: #{tpu_custom_call.1} parent=11 // pred_check
          %p594 = pneg %p342
        $region50: #{tpu_custom_call.1} parent=11 // pred_check_branch
          %596 = sbr.rel (%p594) target = $region52
        $region51: #{tpu_custom_call.1} parent=11 // pred_region
          %s598 = ssub.s32 16, 16
          %599 = vsyncadd [#allocation21], %s598
          %s601 = sshll.u32 [#allocation22], 4
          %s602 = int_to_ptr.vmem [resolvable:$true] %s601
          %604 = dma.hbm_to_vmem [thread:$0]  %s12, 16, %s602, [#allocation21]
        $region52: #{tpu_custom_call.1} parent=11 // pred_fallthru
          _
        // Predicated region
        $region53: #{tpu_custom_call.1} parent=11 // pred_check
          %p605 = pneg %p363
        $region54: #{tpu_custom_call.1} parent=11 // pred_check_branch
          %607 = sbr.rel (%p605) target = $region56
        $region55: #{tpu_custom_call.1} parent=11 // pred_region
          _
        $region56: #{tpu_custom_call.1} parent=11 // pred_fallthru
          _
        // Predicated region
        $region57: #{tpu_custom_call.1} parent=11 // pred_check
          %p608 = pneg %p384
        $region58: #{tpu_custom_call.1} parent=11 // pred_check_branch
          %610 = sbr.rel (%p608) target = $region60
        $region59: #{tpu_custom_call.1} parent=11 // pred_region
          %s612 = ssub.s32 16, 16
          %613 = vsyncadd [#allocation24], %s612
          %s615 = sshll.u32 [#allocation23], 4
          %s616 = int_to_ptr.vmem [resolvable:$true] %s615
          %618 = dma.hbm_to_vmem [thread:$0]  %s14, 16, %s616, [#allocation24]
        $region60: #{tpu_custom_call.1} parent=11 // pred_fallthru
          _
        // Predicated region
        $region61: #{tpu_custom_call.1} parent=11 // pred_check
          %p619 = pneg %p405
        $region62: #{tpu_custom_call.1} parent=11 // pred_check_branch
          %621 = sbr.rel (%p619) target = $region64
        $region63: #{tpu_custom_call.1} parent=11 // pred_region
          %s623 = ssub.s32 16, 16
          %624 = vsyncadd [#allocation24], %s623
          %s626 = sshll.u32 [#allocation25], 4
          %s627 = int_to_ptr.vmem [resolvable:$true] %s626
          %629 = dma.hbm_to_vmem [thread:$0]  %s15, 16, %s627, [#allocation24]
        $region64: #{tpu_custom_call.1} parent=11 // pred_fallthru
          _
        // Predicated region
        $region65: #{tpu_custom_call.1} parent=11 // pred_check
          %p630 = pneg %p426
        $region66: #{tpu_custom_call.1} parent=11 // pred_check_branch
          %632 = sbr.rel (%p630) target = $region68
        $region67: #{tpu_custom_call.1} parent=11 // pred_region
          %s634 = ssub.s32 16, 16
          %635 = vsyncadd [#allocation27], %s634
          %s637 = sshll.u32 [#allocation26], 4
          %s638 = int_to_ptr.vmem [resolvable:$true] %s637
          %640 = dma.hbm_to_vmem [thread:$0]  %s16, 16, %s638, [#allocation27]
        $region68: #{tpu_custom_call.1} parent=11 // pred_fallthru
          _
        // Predicated region
        $region69: #{tpu_custom_call.1} parent=11 // pred_check
          %p641 = pneg %p447
        $region70: #{tpu_custom_call.1} parent=11 // pred_check_branch
          %643 = sbr.rel (%p641) target = $region72
        $region71: #{tpu_custom_call.1} parent=11 // pred_region
          _
        $region72: #{tpu_custom_call.1} parent=11 // pred_fallthru
          _
        // Predicated region
        $region73: #{tpu_custom_call.1} parent=11 // pred_check
          %p644 = pneg %p468
        $region74: #{tpu_custom_call.1} parent=11 // pred_check_branch
          %646 = sbr.rel (%p644) target = $region76
        $region75: #{tpu_custom_call.1} parent=11 // pred_region
          _
        $region76: #{tpu_custom_call.1} parent=11 // pred_fallthru
          _
      $region12: #{tpu_custom_call.1} parent=5 // pred_fallthru
        _
      %p647 = scmp.lt.s32.totalorder %s40, 2
      // Predicated region
      $region77: #{tpu_custom_call.1} parent=5 // pred_check
        %p648 = pneg %p647
      $region78: #{tpu_custom_call.1} parent=5 // pred_check_branch
        %650 = sbr.rel (%p648) target = $region80
      $region79: #{tpu_custom_call.1} parent=5 // pred_region
        // Predicated region
        $region81: #{tpu_custom_call.1} parent=79 // pred_check
          %p651 = pneg %p74
        $region82: #{tpu_custom_call.1} parent=79 // pred_check_branch
          %653 = sbr.rel (%p651) target = $region84
        $region83: #{tpu_custom_call.1} parent=79 // pred_region
          %s654 = sand.u32 %s64, 1
          %s655 = scalar_lea.sflag [#allocation6], %s654
          %s656 = sand.u32 %s64, 1
          %s657 = smul.addr %s656, 8
          %s658 = scalar_lea.vmem [#allocation5], %s657
          %s660 = ssub.s32 128, 128
          %661 = vsyncadd %s655, %s660
          %s662 = sadd.s32 %s48, %s47
          %s663 = smul.addr %s662, 128
          %s664 = scalar_lea.hbm %s0, %s663
          %s666 = sshll.u32 %s658, 4
          %s667 = int_to_ptr.vmem [resolvable:$true] %s666
          %669 = dma.hbm_to_vmem [thread:$0]  %s664, 128, %s667, %s655
        $region84: #{tpu_custom_call.1} parent=79 // pred_fallthru
          _
        // Predicated region
        $region85: #{tpu_custom_call.1} parent=79 // pred_check
          %p670 = pneg %p100
        $region86: #{tpu_custom_call.1} parent=79 // pred_check_branch
          %672 = sbr.rel (%p670) target = $region88
        $region87: #{tpu_custom_call.1} parent=79 // pred_region
          %s673 = sand.u32 %s40, 1
          %s674 = scalar_lea.sflag [#allocation9], %s673
          %s675 = sand.u32 %s90, 1
          %s676 = smul.addr %s675, 16
          %s677 = scalar_lea.vmem [#allocation8], %s676
          %s679 = ssub.s32 256, 256
          %680 = vsyncadd %s674, %s679
          %s681 = smul.addr %s47, 2
          %s682 = smul.addr %s681, 128
          %s683 = scalar_lea.hbm %s1, %s682
          %s684 = sshll.u32 %s677, 4
          %s685 = int_to_ptr.vmem [resolvable:$true] %s684
          %690 = dma.hbm_to_vmem [thread:$0]  %s683, 256, %s685, %s674, 128, 128, 8
        $region88: #{tpu_custom_call.1} parent=79 // pred_fallthru
          _
        // Predicated region
        $region89: #{tpu_custom_call.1} parent=79 // pred_check
          %p691 = pneg %p126
        $region90: #{tpu_custom_call.1} parent=79 // pred_check_branch
          %693 = sbr.rel (%p691) target = $region92
        $region91: #{tpu_custom_call.1} parent=79 // pred_region
          %s694 = sand.u32 %s40, 1
          %s695 = scalar_lea.sflag [#allocation9], %s694
          %s696 = sand.u32 %s116, 1
          %s697 = smul.addr %s696, 16
          %s698 = scalar_lea.vmem [#allocation10], %s697
          %s700 = ssub.s32 256, 256
          %701 = vsyncadd %s695, %s700
          %s702 = smul.addr %s47, 2
          %s703 = smul.addr %s702, 128
          %s704 = scalar_lea.hbm %s2, %s703
          %s705 = sshll.u32 %s698, 4
          %s706 = int_to_ptr.vmem [resolvable:$true] %s705
          %711 = dma.hbm_to_vmem [thread:$0]  %s704, 256, %s706, %s695, 128, 128, 8
        $region92: #{tpu_custom_call.1} parent=79 // pred_fallthru
          _
      $region80: #{tpu_custom_call.1} parent=5 // pred_fallthru
        _
      %p712 = scmp.le.s32.totalorder 1, %s40
      %p713 = scmp.lt.s32.totalorder %s40, 3
      %p714 = pnand %p712, %p713
      %p715 = pneg %p714
      // Predicated region
      $region93: #{tpu_custom_call.1} parent=5 // pred_check
        _
      $region94: #{tpu_custom_call.1} parent=5 // pred_check_branch
        %717 = sbr.rel (%p714) target = $region96
      $region95: #{tpu_custom_call.1} parent=5 // pred_region
        %s718 = ssub.s32 %s40, 1
        %s719 = sand.u32 %s67, 1
        %s720 = scalar_lea.sflag [#allocation6], %s719
        %s721 = sand.u32 %s67, 1
        %s722 = smul.addr %s721, 8
        %s723 = scalar_lea.vmem [#allocation5], %s722
        // Predicated region
        $region97: #{tpu_custom_call.1} parent=95 // pred_check
          %p724 = pneg %p80
        $region98: #{tpu_custom_call.1} parent=95 // pred_check_branch
          %726 = sbr.rel (%p724) target = $region100
        $region99: #{tpu_custom_call.1} parent=95 // pred_region
          %727 = dma.done %s720, 128
        $region100: #{tpu_custom_call.1} parent=95 // pred_fallthru
          _
        %s728 = sand.u32 %s45, 1
        %s729 = scalar_lea.sflag [#allocation9], %s728
        %s730 = sand.u32 %s93, 1
        %s731 = smul.addr %s730, 16
        %s732 = scalar_lea.vmem [#allocation8], %s731
        // Predicated region
        $region101: #{tpu_custom_call.1} parent=95 // pred_check
          %p733 = pneg %p106
        $region102: #{tpu_custom_call.1} parent=95 // pred_check_branch
          %735 = sbr.rel (%p733) target = $region104
        $region103: #{tpu_custom_call.1} parent=95 // pred_region
          %736 = dma.done %s729, 256
        $region104: #{tpu_custom_call.1} parent=95 // pred_fallthru
          _
        %s737 = sand.u32 %s45, 1
        %s738 = scalar_lea.sflag [#allocation9], %s737
        %s739 = sand.u32 %s119, 1
        %s740 = smul.addr %s739, 16
        %s741 = scalar_lea.vmem [#allocation10], %s740
        // Predicated region
        $region105: #{tpu_custom_call.1} parent=95 // pred_check
          %p742 = pneg %p132
        $region106: #{tpu_custom_call.1} parent=95 // pred_check_branch
          %744 = sbr.rel (%p742) target = $region108
        $region107: #{tpu_custom_call.1} parent=95 // pred_region
          %745 = dma.done %s738, 256
        $region108: #{tpu_custom_call.1} parent=95 // pred_fallthru
          _
        // Predicated region
        $region109: #{tpu_custom_call.1} parent=95 // pred_check
          %p746 = pneg %p153
        $region110: #{tpu_custom_call.1} parent=95 // pred_check_branch
          %748 = sbr.rel (%p746) target = $region112
        $region111: #{tpu_custom_call.1} parent=95 // pred_region
          %749 = dma.done [#allocation12], 16
        $region112: #{tpu_custom_call.1} parent=95 // pred_fallthru
          _
        // Predicated region
        $region113: #{tpu_custom_call.1} parent=95 // pred_check
          %p750 = pneg %p174
        $region114: #{tpu_custom_call.1} parent=95 // pred_check_branch
          %752 = sbr.rel (%p750) target = $region116
        $region115: #{tpu_custom_call.1} parent=95 // pred_region
          %753 = dma.done [#allocation12], 16
        $region116: #{tpu_custom_call.1} parent=95 // pred_fallthru
          _
        // Predicated region
        $region117: #{tpu_custom_call.1} parent=95 // pred_check
          %p754 = pneg %p216
        $region118: #{tpu_custom_call.1} parent=95 // pred_check_branch
          %756 = sbr.rel (%p754) target = $region120
        $region119: #{tpu_custom_call.1} parent=95 // pred_region
          %757 = dma.done [#allocation15], 16
        $region120: #{tpu_custom_call.1} parent=95 // pred_fallthru
          _
        // Predicated region
        $region121: #{tpu_custom_call.1} parent=95 // pred_check
          %p758 = pneg %p237
        $region122: #{tpu_custom_call.1} parent=95 // pred_check_branch
          %760 = sbr.rel (%p758) target = $region124
        $region123: #{tpu_custom_call.1} parent=95 // pred_region
          %761 = dma.done [#allocation15], 16
        $region124: #{tpu_custom_call.1} parent=95 // pred_fallthru
          _
        // Predicated region
        $region125: #{tpu_custom_call.1} parent=95 // pred_check
          %p762 = pneg %p258
        $region126: #{tpu_custom_call.1} parent=95 // pred_check_branch
          %764 = sbr.rel (%p762) target = $region128
        $region127: #{tpu_custom_call.1} parent=95 // pred_region
          %765 = dma.done [#allocation18], 16
        $region128: #{tpu_custom_call.1} parent=95 // pred_fallthru
          _
        // Predicated region
        $region129: #{tpu_custom_call.1} parent=95 // pred_check
          %p766 = pneg %p300
        $region130: #{tpu_custom_call.1} parent=95 // pred_check_branch
          %768 = sbr.rel (%p766) target = $region132
        $region131: #{tpu_custom_call.1} parent=95 // pred_region
          %769 = dma.done [#allocation18], 16
        $region132: #{tpu_custom_call.1} parent=95 // pred_fallthru
          _
        // Predicated region
        $region133: #{tpu_custom_call.1} parent=95 // pred_check
          %p770 = pneg %p321
        $region134: #{tpu_custom_call.1} parent=95 // pred_check_branch
          %772 = sbr.rel (%p770) target = $region136
        $region135: #{tpu_custom_call.1} parent=95 // pred_region
          %773 = dma.done [#allocation21], 16
        $region136: #{tpu_custom_call.1} parent=95 // pred_fallthru
          _
        // Predicated region
        $region137: #{tpu_custom_call.1} parent=95 // pred_check
          %p774 = pneg %p342
        $region138: #{tpu_custom_call.1} parent=95 // pred_check_branch
          %776 = sbr.rel (%p774) target = $region140
        $region139: #{tpu_custom_call.1} parent=95 // pred_region
          %777 = dma.done [#allocation21], 16
        $region140: #{tpu_custom_call.1} parent=95 // pred_fallthru
          _
        // Predicated region
        $region141: #{tpu_custom_call.1} parent=95 // pred_check
          %p778 = pneg %p384
        $region142: #{tpu_custom_call.1} parent=95 // pred_check_branch
          %780 = sbr.rel (%p778) target = $region144
        $region143: #{tpu_custom_call.1} parent=95 // pred_region
          %781 = dma.done [#allocation24], 16
        $region144: #{tpu_custom_call.1} parent=95 // pred_fallthru
          _
        // Predicated region
        $region145: #{tpu_custom_call.1} parent=95 // pred_check
          %p782 = pneg %p405
        $region146: #{tpu_custom_call.1} parent=95 // pred_check_branch
          %784 = sbr.rel (%p782) target = $region148
        $region147: #{tpu_custom_call.1} parent=95 // pred_region
          %785 = dma.done [#allocation24], 16
        $region148: #{tpu_custom_call.1} parent=95 // pred_fallthru
          _
        // Predicated region
        $region149: #{tpu_custom_call.1} parent=95 // pred_check
          %p786 = pneg %p426
        $region150: #{tpu_custom_call.1} parent=95 // pred_check_branch
          %788 = sbr.rel (%p786) target = $region152
        $region151: #{tpu_custom_call.1} parent=95 // pred_region
          %789 = dma.done [#allocation27], 16
        $region152: #{tpu_custom_call.1} parent=95 // pred_fallthru
          _
        %s790 = sand.u32 %s67, 1
        %s791 = scalar_lea.sflag [#allocation6], %s790
        %s792 = sand.u32 %s67, 1
        %s793 = smul.addr %s792, 8
        %s794 = scalar_lea.vmem [#allocation5], %s793
        %p795 = pneg %p80
        %p796 = pneg %p77
        %s797 = sand.u32 %s45, 1
        %s798 = scalar_lea.sflag [#allocation9], %s797
        %s799 = sand.u32 %s93, 1
        %s800 = smul.addr %s799, 16
        %s801 = scalar_lea.vmem [#allocation8], %s800
        %p802 = pneg %p106
        %p803 = pneg %p103
        %s804 = sand.u32 %s45, 1
        %s805 = scalar_lea.sflag [#allocation9], %s804
        %s806 = sand.u32 %s119, 1
        %s807 = smul.addr %s806, 16
        %s808 = scalar_lea.vmem [#allocation10], %s807
        %p809 = pneg %p132
        %p810 = pneg %p129
        %p811 = pneg %p153
        %p812 = pneg %p150
        %p813 = pneg %p174
        %p814 = pneg %p171
        %p815 = pneg %p195
        %p816 = pneg %p192
        %p817 = pneg %p216
        %p818 = pneg %p213
        %p819 = pneg %p237
        %p820 = pneg %p234
        %p821 = pneg %p258
        %p822 = pneg %p255
        %p823 = pneg %p279
        %p824 = pneg %p276
        %p825 = pneg %p300
        %p826 = pneg %p297
        %p827 = pneg %p321
        %p828 = pneg %p318
        %p829 = pneg %p342
        %p830 = pneg %p339
        %p831 = pneg %p363
        %p832 = pneg %p360
        %p833 = pneg %p384
        %p834 = pneg %p381
        %p835 = pneg %p405
        %p836 = pneg %p402
        %p837 = pneg %p426
        %p838 = pneg %p423
        %p839 = pneg %p447
        %p840 = pneg %p444
        %p841 = pneg %p468
        %p842 = pneg %p465
        %p843 = pneg %p496
        %p844 = pneg %p493
        %s845 = sand.u32 %s483, 1
        %s846 = scalar_lea.sflag [#allocation7], %s845
        %s847 = sand.u32 %s483, 1
        %s848 = smul.addr %s847, 8
        %s849 = scalar_lea.vmem [#allocation28], %s848
        %p851 = scmp.eq.s32.totalorder %s50, 0
        // Predicated region
        $region153: #{tpu_custom_call.1} parent=95 // pred_check
          %p852 = pneg %p851
        $region154: #{tpu_custom_call.1} parent=95 // pred_check_branch
          %854 = sbr.rel (%p852) target = $region156
        $region155: #{tpu_custom_call.1} parent=95 // pred_region
          %v855 = vld [vmem:[%s732] sm:$0xff]
          %v856 = vld [vmem:[%s732 + $0x8] sm:$0xff]
          %v857 = vld [vmem:[#allocation16] sm:$0x1]
          %v858 = vld [vmem:[#allocation17] sm:$0x1]
          %v859 = vld [vmem:[%s9] sm:$0xf]
          %v860 = vld [vmem:[%s9 + $0x4] sm:$0xf]
          %v861 = vld [vmem:[%s9 + $0x8] sm:$0xf]
          %v862 = vld [vmem:[%s9 + $0xc] sm:$0xf]
          %v863 = vld [vmem:[#allocation19] sm:$0x1]
          %vm864 = vcmask 261120
          %v865 = vsel %vm864, %v855, 0.0
          %866 = vadd.xlane.f32.xlu0 %v865
          %v867 = vpop.xlane.xlu0 %866
          %v868 = vsel %vm864, %v856, 0.0
          %869 = vadd.xlane.f32.xlu0 %v868
          %v870 = vpop.xlane.xlu0 %869
          %v871 = vrcp.pop 32.0
          %v872 = vmul.f32 %v867, %v871
          %v873 = vmul.f32 %v870, %v871
          %v874 = vsub.f32 %v855, %v872
          %v875 = vsub.f32 %v856, %v873
          %v876 = vmul.f32 %v874, %v874
          %v877 = vmul.f32 %v875, %v875
          %v878 = vsel %vm864, %v876, 0.0
          %879 = vadd.xlane.f32.xlu0 %v878
          %v880 = vpop.xlane.xlu0 %879
          %v881 = vsel %vm864, %v877, 0.0
          %882 = vadd.xlane.f32.xlu0 %v881
          %v883 = vpop.xlane.xlu0 %882
          %v884 = vmul.f32 %v880, %v871
          %v885 = vmul.f32 %v883, %v871
          %v886 = vadd.f32 %v884, 1e-05
          %v887 = vadd.f32 %v885, 1e-05
          %v888 = vrsqrt.pop %v886
          %v889 = vrsqrt.pop %v887
          %v890 = vmul.f32 %v874, %v888
          %v891 = vmul.f32 %v875, %v889
          %v893 = vlaneseq
          %v894 = vshrl.u32 %v893, 7
          %v895 = vsub.s32 0, %v894
          %v896 = vrot.slane %v857, %v895
          %v898 = vmul.f32 %v890, %v896
          %v899 = vmul.f32 %v891, %v896
          %v901 = vlaneseq
          %v902 = vshrl.u32 %v901, 7
          %v903 = vsub.s32 0, %v902
          %v904 = vrot.slane %v858, %v903
          %v906 = vadd.f32 %v898, %v904
          %v907 = vadd.f32 %v899, %v904
          %v908 = vpack.c.bf16 %v907, %v906
          %v910 = vlaneseq
          %v911 = vshrl.u32 %v910, 7
          %v912 = vsub.s32 0, %v911
          %v913 = vrot.slane %v863, %v912
          %v919 = vunpack.c.l.b16 %v859
          %v920 = vunpack.c.l.b16 %v860
          %v921 = vunpack.c.l.b16 %v861
          %v922 = vunpack.c.l.b16 %v862
          %v923 = vpack.c.b16 %v920, %v919
          %v924 = vpack.c.b16 %v922, %v921
          %v928 = vsel %vm864, %v908, 0
          %930 = vmatprep.subr.bf16.mxu0 0
          %931 = vmatpush1.bf16.msra.mxu0 %v923
          %932 = vmatprep.subr.bf16.mxu0 0
          %933 = vmatpush1.bf16.msra.mxu0 %v924
          %934 = vmatprep.subr.bf16.mxu0 0
          %935 = vmatpush1.bf16.msra.mxu0 0
          %936 = vmatprep.subr.bf16.mxu0 0
          %937 = vmatpush1.bf16.msra.mxu0 0
          %938 = vmatprep.subr.bf16.mxu0 0
          %939 = vmatpush1.bf16.msra.mxu0 0
          %940 = vmatprep.subr.bf16.mxu0 0
          %941 = vmatpush1.bf16.msra.mxu0 0
          %942 = vmatprep.subr.bf16.mxu0 0
          %943 = vmatpush1.bf16.msra.mxu0 0
          %944 = vmatprep.subr.bf16.mxu0 0
          %945 = vmatpush1.bf16.msra.mxu0 0
          %946 = vmatprep.subr.bf16.mxu0 0
          %947 = vmatpush1.bf16.msra.mxu0 0
          %948 = vmatprep.subr.bf16.mxu0 0
          %949 = vmatpush1.bf16.msra.mxu0 0
          %950 = vmatprep.subr.bf16.mxu0 0
          %951 = vmatpush1.bf16.msra.mxu0 0
          %952 = vmatprep.subr.bf16.mxu0 0
          %953 = vmatpush1.bf16.msra.mxu0 0
          %954 = vmatprep.subr.bf16.mxu0 0
          %955 = vmatpush1.bf16.msra.mxu0 0
          %956 = vmatprep.subr.bf16.mxu0 0
          %957 = vmatpush1.bf16.msra.mxu0 0
          %958 = vmatprep.subr.bf16.mxu0 0
          %959 = vmatpush1.bf16.msra.mxu0 0
          %960 = vmatprep.subr.bf16.mxu0 0
          %961 = vmatpush1.bf16.msra.mxu0 0
          %962 = vmatprep.mubr.bf16.mxu0 0
          %963 = vmatmul.mubr.bf16.gmra.mrb[0].mxu0 %v928
          %v964 = vpop.f32.mrb[0].mxu0
          %v965 = vadd.f32 %v913, %v964
          %v966 = vpop.f32.mrb[0].mxu0
          %v967 = vpop.f32.mrb[0].mxu0
          %v968 = vadd.f32 %v913, %v967
          %v969 = vpop.f32.mrb[0].mxu0
          %970 = vdwg.mxu0
          %v971 = vpack.c.bf16 %v968, %v965
          %972 = vst.msk [vmem:[#allocation2] sm:$0xff] %vm864, %v971
          %v973 = vld [vmem:[%s741] sm:$0xff]
          %v974 = vld [vmem:[%s741 + $0x8] sm:$0xff]
          %v975 = vld [vmem:[#allocation20] sm:$0x1]
          %v976 = vld [vmem:[#allocation22] sm:$0x1]
          %v977 = vld [vmem:[%s13] sm:$0xf]
          %v978 = vld [vmem:[%s13 + $0x4] sm:$0xf]
          %v979 = vld [vmem:[%s13 + $0x8] sm:$0xf]
          %v980 = vld [vmem:[%s13 + $0xc] sm:$0xf]
          %v981 = vld [vmem:[#allocation23] sm:$0x1]
          %v982 = vsel %vm864, %v973, 0.0
          %983 = vadd.xlane.f32.xlu0 %v982
          %v984 = vpop.xlane.xlu0 %983
          %v985 = vsel %vm864, %v974, 0.0
          %986 = vadd.xlane.f32.xlu0 %v985
          %v987 = vpop.xlane.xlu0 %986
          %v988 = vmul.f32 %v984, %v871
          %v989 = vmul.f32 %v987, %v871
          %v990 = vsub.f32 %v973, %v988
          %v991 = vsub.f32 %v974, %v989
          %v992 = vmul.f32 %v990, %v990
          %v993 = vmul.f32 %v991, %v991
          %v994 = vsel %vm864, %v992, 0.0
          %995 = vadd.xlane.f32.xlu0 %v994
          %v996 = vpop.xlane.xlu0 %995
          %v997 = vsel %vm864, %v993, 0.0
          %998 = vadd.xlane.f32.xlu0 %v997
          %v999 = vpop.xlane.xlu0 %998
          %v1000 = vmul.f32 %v996, %v871
          %v1001 = vmul.f32 %v999, %v871
          %v1002 = vadd.f32 %v1000, 1e-05
          %v1003 = vadd.f32 %v1001, 1e-05
          %v1004 = vrsqrt.pop %v1002
          %v1005 = vrsqrt.pop %v1003
          %v1006 = vmul.f32 %v990, %v1004
          %v1007 = vmul.f32 %v991, %v1005
          %v1009 = vlaneseq
          %v1010 = vshrl.u32 %v1009, 7
          %v1011 = vsub.s32 0, %v1010
          %v1012 = vrot.slane %v975, %v1011
          %v1014 = vmul.f32 %v1006, %v1012
          %v1015 = vmul.f32 %v1007, %v1012
          %v1017 = vlaneseq
          %v1018 = vshrl.u32 %v1017, 7
          %v1019 = vsub.s32 0, %v1018
          %v1020 = vrot.slane %v976, %v1019
          %v1022 = vadd.f32 %v1014, %v1020
          %v1023 = vadd.f32 %v1015, %v1020
          %v1024 = vpack.c.bf16 %v1023, %v1022
          %v1026 = vlaneseq
          %v1027 = vshrl.u32 %v1026, 7
          %v1028 = vsub.s32 0, %v1027
          %v1029 = vrot.slane %v981, %v1028
          %v1035 = vunpack.c.l.b16 %v977
          %v1036 = vunpack.c.l.b16 %v978
          %v1037 = vunpack.c.l.b16 %v979
          %v1038 = vunpack.c.l.b16 %v980
          %v1039 = vpack.c.b16 %v1036, %v1035
          %v1040 = vpack.c.b16 %v1038, %v1037
          %v1044 = vsel %vm864, %v1024, 0
          %1046 = vmatprep.subr.bf16.mxu0 0
          %1047 = vmatpush1.bf16.msra.mxu0 %v1039
          %1048 = vmatprep.subr.bf16.mxu0 0
          %1049 = vmatpush1.bf16.msra.mxu0 %v1040
          %1050 = vmatprep.subr.bf16.mxu0 0
          %1051 = vmatpush1.bf16.msra.mxu0 0
          %1052 = vmatprep.subr.bf16.mxu0 0
          %1053 = vmatpush1.bf16.msra.mxu0 0
          %1054 = vmatprep.subr.bf16.mxu0 0
          %1055 = vmatpush1.bf16.msra.mxu0 0
          %1056 = vmatprep.subr.bf16.mxu0 0
          %1057 = vmatpush1.bf16.msra.mxu0 0
          %1058 = vmatprep.subr.bf16.mxu0 0
          %1059 = vmatpush1.bf16.msra.mxu0 0
          %1060 = vmatprep.subr.bf16.mxu0 0
          %1061 = vmatpush1.bf16.msra.mxu0 0
          %1062 = vmatprep.subr.bf16.mxu0 0
          %1063 = vmatpush1.bf16.msra.mxu0 0
          %1064 = vmatprep.subr.bf16.mxu0 0
          %1065 = vmatpush1.bf16.msra.mxu0 0
          %1066 = vmatprep.subr.bf16.mxu0 0
          %1067 = vmatpush1.bf16.msra.mxu0 0
          %1068 = vmatprep.subr.bf16.mxu0 0
          %1069 = vmatpush1.bf16.msra.mxu0 0
          %1070 = vmatprep.subr.bf16.mxu0 0
          %1071 = vmatpush1.bf16.msra.mxu0 0
          %1072 = vmatprep.subr.bf16.mxu0 0
          %1073 = vmatpush1.bf16.msra.mxu0 0
          %1074 = vmatprep.subr.bf16.mxu0 0
          %1075 = vmatpush1.bf16.msra.mxu0 0
          %1076 = vmatprep.subr.bf16.mxu0 0
          %1077 = vmatpush1.bf16.msra.mxu0 0
          %1078 = vmatprep.mubr.bf16.mxu0 0
          %1079 = vmatmul.mubr.bf16.gmra.mrb[0].mxu0 %v1044
          %v1080 = vpop.f32.mrb[0].mxu0
          %v1081 = vadd.f32 %v1029, %v1080
          %v1082 = vpop.f32.mrb[0].mxu0
          %v1083 = vpop.f32.mrb[0].mxu0
          %v1084 = vadd.f32 %v1029, %v1083
          %v1085 = vpop.f32.mrb[0].mxu0
          %1086 = vdwg.mxu0
          %v1087 = vpack.c.bf16 %v1084, %v1081
          %1088 = vst.msk [vmem:[#allocation3] sm:$0xff] %vm864, %v1087
        $region156: #{tpu_custom_call.1} parent=95 // pred_fallthru
          _
        %v1089 = vld [vmem:[%s723] sm:$0xff]
        %v1090 = vld [vmem:[#allocation11] sm:$0x1]
        %v1091 = vld [vmem:[#allocation13] sm:$0x1]
        %v1092 = vld [vmem:[%s5] sm:$0xf]
        %v1093 = vld [vmem:[%s5 + $0x4] sm:$0xf]
        %v1094 = vld [vmem:[%s5 + $0x8] sm:$0xf]
        %v1095 = vld [vmem:[%s5 + $0xc] sm:$0xf]
        %v1096 = vld [vmem:[#allocation14] sm:$0x1]
        %vm1097 = vcmask 261120
        %v1098 = vsel %vm1097, %v1089, 0.0
        %1099 = vadd.xlane.f32.xlu0 %v1098
        %v1100 = vpop.xlane.xlu0 %1099
        %v1101 = vrcp.pop 32.0
        %v1102 = vmul.f32 %v1100, %v1101
        %v1103 = vsub.f32 %v1089, %v1102
        %v1104 = vmul.f32 %v1103, %v1103
        %v1105 = vsel %vm1097, %v1104, 0.0
        %1106 = vadd.xlane.f32.xlu0 %v1105
        %v1107 = vpop.xlane.xlu0 %1106
        %v1108 = vmul.f32 %v1107, %v1101
        %v1109 = vadd.f32 %v1108, 1e-05
        %v1110 = vrsqrt.pop %v1109
        %v1111 = vmul.f32 %v1103, %v1110
        %v1113 = vlaneseq
        %v1114 = vshrl.u32 %v1113, 7
        %v1115 = vsub.s32 0, %v1114
        %v1116 = vrot.slane %v1090, %v1115
        %v1118 = vmul.f32 %v1111, %v1116
        %v1120 = vlaneseq
        %v1121 = vshrl.u32 %v1120, 7
        %v1122 = vsub.s32 0, %v1121
        %v1123 = vrot.slane %v1091, %v1122
        %v1125 = vadd.f32 %v1118, %v1123
        %v1126 = vpack.c.bf16 %v1125, %v1125
        %v1128 = vlaneseq
        %v1129 = vshrl.u32 %v1128, 7
        %v1130 = vsub.s32 0, %v1129
        %v1131 = vrot.slane %v1096, %v1130
        %v1137 = vunpack.c.l.b16 %v1092
        %v1138 = vunpack.c.l.b16 %v1093
        %v1139 = vunpack.c.l.b16 %v1094
        %v1140 = vunpack.c.l.b16 %v1095
        %v1141 = vpack.c.b16 %v1138, %v1137
        %v1142 = vpack.c.b16 %v1140, %v1139
        %v1146 = vsel %vm1097, %v1126, 0
        %1148 = vmatprep.subr.bf16.mxu0 0
        %1149 = vmatpush1.bf16.msra.mxu0 %v1141
        %1150 = vmatprep.subr.bf16.mxu0 0
        %1151 = vmatpush1.bf16.msra.mxu0 %v1142
        %1152 = vmatprep.subr.bf16.mxu0 0
        %1153 = vmatpush1.bf16.msra.mxu0 0
        %1154 = vmatprep.subr.bf16.mxu0 0
        %1155 = vmatpush1.bf16.msra.mxu0 0
        %1156 = vmatprep.subr.bf16.mxu0 0
        %1157 = vmatpush1.bf16.msra.mxu0 0
        %1158 = vmatprep.subr.bf16.mxu0 0
        %1159 = vmatpush1.bf16.msra.mxu0 0
        %1160 = vmatprep.subr.bf16.mxu0 0
        %1161 = vmatpush1.bf16.msra.mxu0 0
        %1162 = vmatprep.subr.bf16.mxu0 0
        %1163 = vmatpush1.bf16.msra.mxu0 0
        %1164 = vmatprep.subr.bf16.mxu0 0
        %1165 = vmatpush1.bf16.msra.mxu0 0
        %1166 = vmatprep.subr.bf16.mxu0 0
        %1167 = vmatpush1.bf16.msra.mxu0 0
        %1168 = vmatprep.subr.bf16.mxu0 0
        %1169 = vmatpush1.bf16.msra.mxu0 0
        %1170 = vmatprep.subr.bf16.mxu0 0
        %1171 = vmatpush1.bf16.msra.mxu0 0
        %1172 = vmatprep.subr.bf16.mxu0 0
        %1173 = vmatpush1.bf16.msra.mxu0 0
        %1174 = vmatprep.subr.bf16.mxu0 0
        %1175 = vmatpush1.bf16.msra.mxu0 0
        %1176 = vmatprep.subr.bf16.mxu0 0
        %1177 = vmatpush1.bf16.msra.mxu0 0
        %1178 = vmatprep.subr.bf16.mxu0 0
        %1179 = vmatpush1.bf16.msra.mxu0 0
        %1180 = vmatprep.mubr.bf16.mxu0 0
        %1181 = vmatmul.mubr.bf16.gmra.mrb[0].mxu0 %v1146
        %v1182 = vpop.f32.mrb[0].mxu0
        %v1183 = vadd.f32 %v1131, %v1182
        %v1184 = vpop.f32.mrb[0].mxu0
        %v1185 = vpop.f32.mrb[0].mxu0
        %v1186 = vpop.f32.mrb[0].mxu0
        %1187 = vdwg.mxu0
        %v1188 = vpack.c.bf16 %v1183, %v1183
        %v1189 = vld [vmem:[#allocation2] sm:$0xff]
        %v1190 = vld [vmem:[#allocation3] sm:$0xff]
        %vm1191 = vcmask 64512
        %v1193 = vsel %vm1191, %v1188, 0
        %v1196 = vsel %vm1191, %v1189, 0
        %1198 = vmatprep.subr.bf16.mxu0 0
        %1199 = vmatpush1.bf16.xpose.msra.mxu0 %v1196
        %1200 = vmatprep.subr.bf16.mxu0 0
        %1201 = vmatpush1.bf16.xpose.msra.mxu0 0
        %1202 = vmatprep.subr.bf16.mxu0 0
        %1203 = vmatpush1.bf16.xpose.msra.mxu0 0
        %1204 = vmatprep.subr.bf16.mxu0 0
        %1205 = vmatpush1.bf16.xpose.msra.mxu0 0
        %1206 = vmatprep.subr.bf16.mxu0 0
        %1207 = vmatpush1.bf16.xpose.msra.mxu0 0
        %1208 = vmatprep.subr.bf16.mxu0 0
        %1209 = vmatpush1.bf16.xpose.msra.mxu0 0
        %1210 = vmatprep.subr.bf16.mxu0 0
        %1211 = vmatpush1.bf16.xpose.msra.mxu0 0
        %1212 = vmatprep.subr.bf16.mxu0 0
        %1213 = vmatpush1.bf16.xpose.msra.mxu0 0
        %1214 = vmatprep.subr.bf16.mxu0 0
        %1215 = vmatpush1.bf16.xpose.msra.mxu0 0
        %1216 = vmatprep.subr.bf16.mxu0 0
        %1217 = vmatpush1.bf16.xpose.msra.mxu0 0
        %1218 = vmatprep.subr.bf16.mxu0 0
        %1219 = vmatpush1.bf16.xpose.msra.mxu0 0
        %1220 = vmatprep.subr.bf16.mxu0 0
        %1221 = vmatpush1.bf16.xpose.msra.mxu0 0
        %1222 = vmatprep.subr.bf16.mxu0 0
        %1223 = vmatpush1.bf16.xpose.msra.mxu0 0
        %1224 = vmatprep.subr.bf16.mxu0 0
        %1225 = vmatpush1.bf16.xpose.msra.mxu0 0
        %1226 = vmatprep.subr.bf16.mxu0 0
        %1227 = vmatpush1.bf16.xpose.msra.mxu0 0
        %1228 = vmatprep.subr.bf16.mxu0 0
        %1229 = vmatpush1.bf16.xpose.msra.mxu0 0
        %1230 = vmatprep.mubr.bf16.mxu0 0
        %1231 = vmatmul.mubr.bf16.gmra.mrb[0].mxu0 %v1193
        %v1232 = vpop.f32.mrb[0].mxu0
        %v1233 = vadd.f32 0.0, %v1232
        %v1234 = vpop.f32.mrb[0].mxu0
        %v1235 = vpop.f32.mrb[0].mxu0
        %v1236 = vpop.f32.mrb[0].mxu0
        %1237 = vdwg.mxu0
        %vm1238 = vcmask 130048
        %v1239 = vsel %vm1238, %v1233, -inf
        %1240 = vmax.xlane.f32.xlu0 %v1239
        %v1241 = vpop.xlane.xlu0 %1240
        %v1242 = vsub.f32 %v1233, %v1241
        %v1243 = vmul.f32 %v1242, 1.442695
        %v1244 = vpow.pop %v1243
        %v1245 = vsel %vm1238, %v1244, 0.0
        %1246 = vadd.xlane.f32.xlu0 %v1245
        %v1247 = vpop.xlane.xlu0 %1246
        %v1248 = vrcp.pop %v1247
        %v1249 = vmul.f32 %v1244, %v1248
        %v1250 = vpack.c.bf16 %v1249, %v1249
        %v1252 = vsel %vm1238, %v1250, 0
        %1254 = vmatprep.subr.bf16.mxu0 0
        %1255 = vmatpush1.bf16.msra.mxu0 %v1190
        %1256 = vmatprep.subr.bf16.mxu0 0
        %1257 = vmatpush1.bf16.msra.mxu0 0
        %1258 = vmatprep.subr.bf16.mxu0 0
        %1259 = vmatpush1.bf16.msra.mxu0 0
        %1260 = vmatprep.subr.bf16.mxu0 0
        %1261 = vmatpush1.bf16.msra.mxu0 0
        %1262 = vmatprep.subr.bf16.mxu0 0
        %1263 = vmatpush1.bf16.msra.mxu0 0
        %1264 = vmatprep.subr.bf16.mxu0 0
        %1265 = vmatpush1.bf16.msra.mxu0 0
        %1266 = vmatprep.subr.bf16.mxu0 0
        %1267 = vmatpush1.bf16.msra.mxu0 0
        %1268 = vmatprep.subr.bf16.mxu0 0
        %1269 = vmatpush1.bf16.msra.mxu0 0
        %1270 = vmatprep.subr.bf16.mxu0 0
        %1271 = vmatpush1.bf16.msra.mxu0 0
        %1272 = vmatprep.subr.bf16.mxu0 0
        %1273 = vmatpush1.bf16.msra.mxu0 0
        %1274 = vmatprep.subr.bf16.mxu0 0
        %1275 = vmatpush1.bf16.msra.mxu0 0
        %1276 = vmatprep.subr.bf16.mxu0 0
        %1277 = vmatpush1.bf16.msra.mxu0 0
        %1278 = vmatprep.subr.bf16.mxu0 0
        %1279 = vmatpush1.bf16.msra.mxu0 0
        %1280 = vmatprep.subr.bf16.mxu0 0
        %1281 = vmatpush1.bf16.msra.mxu0 0
        %1282 = vmatprep.subr.bf16.mxu0 0
        %1283 = vmatpush1.bf16.msra.mxu0 0
        %1284 = vmatprep.subr.bf16.mxu0 0
        %1285 = vmatpush1.bf16.msra.mxu0 0
        %1286 = vmatprep.mubr.bf16.mxu0 0
        %1287 = vmatmul.mubr.bf16.gmra.mrb[0].mxu0 %v1252
        %v1288 = vpop.f32.mrb[0].mxu0
        %v1289 = vadd.f32 0.0, %v1288
        %v1290 = vpop.f32.mrb[0].mxu0
        %v1291 = vpop.f32.mrb[0].mxu0
        %v1292 = vpop.f32.mrb[0].mxu0
        %1293 = vdwg.mxu0
        %1294 = vst.msk [vmem:[#allocation4] sm:$0xff] %vm1191, %v1289
        %1296 = vrot.lane.b32.xlu0 %v1188, 120
        %v1297 = vpop.permute.xlu0 %1296
        %1299 = vrot.lane.b32.xlu0 %v1189, 120
        %v1300 = vpop.permute.xlu0 %1299
        %v1302 = vsel %vm1191, %v1297, 0
        %v1305 = vsel %vm1191, %v1300, 0
        %1307 = vmatprep.subr.bf16.mxu0 0
        %1308 = vmatpush1.bf16.xpose.msra.mxu0 %v1305
        %1309 = vmatprep.subr.bf16.mxu0 0
        %1310 = vmatpush1.bf16.xpose.msra.mxu0 0
        %1311 = vmatprep.subr.bf16.mxu0 0
        %1312 = vmatpush1.bf16.xpose.msra.mxu0 0
        %1313 = vmatprep.subr.bf16.mxu0 0
        %1314 = vmatpush1.bf16.xpose.msra.mxu0 0
        %1315 = vmatprep.subr.bf16.mxu0 0
        %1316 = vmatpush1.bf16.xpose.msra.mxu0 0
        %1317 = vmatprep.subr.bf16.mxu0 0
        %1318 = vmatpush1.bf16.xpose.msra.mxu0 0
        %1319 = vmatprep.subr.bf16.mxu0 0
        %1320 = vmatpush1.bf16.xpose.msra.mxu0 0
        %1321 = vmatprep.subr.bf16.mxu0 0
        %1322 = vmatpush1.bf16.xpose.msra.mxu0 0
        %1323 = vmatprep.subr.bf16.mxu0 0
        %1324 = vmatpush1.bf16.xpose.msra.mxu0 0
        %1325 = vmatprep.subr.bf16.mxu0 0
        %1326 = vmatpush1.bf16.xpose.msra.mxu0 0
        %1327 = vmatprep.subr.bf16.mxu0 0
        %1328 = vmatpush1.bf16.xpose.msra.mxu0 0
        %1329 = vmatprep.subr.bf16.mxu0 0
        %1330 = vmatpush1.bf16.xpose.msra.mxu0 0
        %1331 = vmatprep.subr.bf16.mxu0 0
        %1332 = vmatpush1.bf16.xpose.msra.mxu0 0
        %1333 = vmatprep.subr.bf16.mxu0 0
        %1334 = vmatpush1.bf16.xpose.msra.mxu0 0
        %1335 = vmatprep.subr.bf16.mxu0 0
        %1336 = vmatpush1.bf16.xpose.msra.mxu0 0
        %1337 = vmatprep.subr.bf16.mxu0 0
        %1338 = vmatpush1.bf16.xpose.msra.mxu0 0
        %1339 = vmatprep.mubr.bf16.mxu0 0
        %1340 = vmatmul.mubr.bf16.gmra.mrb[0].mxu0 %v1302
        %v1341 = vpop.f32.mrb[0].mxu0
        %v1342 = vadd.f32 0.0, %v1341
        %v1343 = vpop.f32.mrb[0].mxu0
        %v1344 = vpop.f32.mrb[0].mxu0
        %v1345 = vpop.f32.mrb[0].mxu0
        %1346 = vdwg.mxu0
        %v1347 = vsel %vm1238, %v1342, -inf
        %1348 = vmax.xlane.f32.xlu0 %v1347
        %v1349 = vpop.xlane.xlu0 %1348
        %v1350 = vsub.f32 %v1342, %v1349
        %v1351 = vmul.f32 %v1350, 1.442695
        %v1352 = vpow.pop %v1351
        %v1353 = vsel %vm1238, %v1352, 0.0
        %1354 = vadd.xlane.f32.xlu0 %v1353
        %v1355 = vpop.xlane.xlu0 %1354
        %v1356 = vrcp.pop %v1355
        %v1357 = vmul.f32 %v1352, %v1356
        %v1358 = vpack.c.bf16 %v1357, %v1357
        %1360 = vrot.lane.b32.xlu0 %v1190, 120
        %v1361 = vpop.permute.xlu0 %1360
        %v1364 = vsel %vm1238, %v1358, 0
        %1366 = vmatprep.subr.bf16.mxu0 0
        %1367 = vmatpush1.bf16.msra.mxu0 %v1361
        %1368 = vmatprep.subr.bf16.mxu0 0
        %1369 = vmatpush1.bf16.msra.mxu0 0
        %1370 = vmatprep.subr.bf16.mxu0 0
        %1371 = vmatpush1.bf16.msra.mxu0 0
        %1372 = vmatprep.subr.bf16.mxu0 0
        %1373 = vmatpush1.bf16.msra.mxu0 0
        %1374 = vmatprep.subr.bf16.mxu0 0
        %1375 = vmatpush1.bf16.msra.mxu0 0
        %1376 = vmatprep.subr.bf16.mxu0 0
        %1377 = vmatpush1.bf16.msra.mxu0 0
        %1378 = vmatprep.subr.bf16.mxu0 0
        %1379 = vmatpush1.bf16.msra.mxu0 0
        %1380 = vmatprep.subr.bf16.mxu0 0
        %1381 = vmatpush1.bf16.msra.mxu0 0
        %1382 = vmatprep.subr.bf16.mxu0 0
        %1383 = vmatpush1.bf16.msra.mxu0 0
        %1384 = vmatprep.subr.bf16.mxu0 0
        %1385 = vmatpush1.bf16.msra.mxu0 0
        %1386 = vmatprep.subr.bf16.mxu0 0
        %1387 = vmatpush1.bf16.msra.mxu0 0
        %1388 = vmatprep.subr.bf16.mxu0 0
        %1389 = vmatpush1.bf16.msra.mxu0 0
        %1390 = vmatprep.subr.bf16.mxu0 0
        %1391 = vmatpush1.bf16.msra.mxu0 0
        %1392 = vmatprep.subr.bf16.mxu0 0
        %1393 = vmatpush1.bf16.msra.mxu0 0
        %1394 = vmatprep.subr.bf16.mxu0 0
        %1395 = vmatpush1.bf16.msra.mxu0 0
        %1396 = vmatprep.subr.bf16.mxu0 0
        %1397 = vmatpush1.bf16.msra.mxu0 0
        %1398 = vmatprep.mubr.bf16.mxu0 0
        %1399 = vmatmul.mubr.bf16.gmra.mrb[0].mxu0 %v1364
        %v1400 = vpop.f32.mrb[0].mxu0
        %v1401 = vadd.f32 0.0, %v1400
        %v1402 = vpop.f32.mrb[0].mxu0
        %v1403 = vpop.f32.mrb[0].mxu0
        %v1404 = vpop.f32.mrb[0].mxu0
        %1405 = vdwg.mxu0
        %1407 = vrot.lane.b32.xlu0 %v1401, 8
        %v1408 = vpop.permute.xlu0 %1407
        %vm1410 = vcmask 130112
        %1411 = vst.msk [vmem:[#allocation4] sm:$0xff] %vm1410, %v1408
        %1412 = vrot.lane.b32.xlu0 %v1188, 112
        %v1413 = vpop.permute.xlu0 %1412
        %1414 = vrot.lane.b32.xlu0 %v1189, 112
        %v1415 = vpop.permute.xlu0 %1414
        %v1417 = vsel %vm1191, %v1413, 0
        %v1420 = vsel %vm1191, %v1415, 0
        %1422 = vmatprep.subr.bf16.mxu0 0
        %1423 = vmatpush1.bf16.xpose.msra.mxu0 %v1420
        %1424 = vmatprep.subr.bf16.mxu0 0
        %1425 = vmatpush1.bf16.xpose.msra.mxu0 0
        %1426 = vmatprep.subr.bf16.mxu0 0
        %1427 = vmatpush1.bf16.xpose.msra.mxu0 0
        %1428 = vmatprep.subr.bf16.mxu0 0
        %1429 = vmatpush1.bf16.xpose.msra.mxu0 0
        %1430 = vmatprep.subr.bf16.mxu0 0
        %1431 = vmatpush1.bf16.xpose.msra.mxu0 0
        %1432 = vmatprep.subr.bf16.mxu0 0
        %1433 = vmatpush1.bf16.xpose.msra.mxu0 0
        %1434 = vmatprep.subr.bf16.mxu0 0
        %1435 = vmatpush1.bf16.xpose.msra.mxu0 0
        %1436 = vmatprep.subr.bf16.mxu0 0
        %1437 = vmatpush1.bf16.xpose.msra.mxu0 0
        %1438 = vmatprep.subr.bf16.mxu0 0
        %1439 = vmatpush1.bf16.xpose.msra.mxu0 0
        %1440 = vmatprep.subr.bf16.mxu0 0
        %1441 = vmatpush1.bf16.xpose.msra.mxu0 0
        %1442 = vmatprep.subr.bf16.mxu0 0
        %1443 = vmatpush1.bf16.xpose.msra.mxu0 0
        %1444 = vmatprep.subr.bf16.mxu0 0
        %1445 = vmatpush1.bf16.xpose.msra.mxu0 0
        %1446 = vmatprep.subr.bf16.mxu0 0
        %1447 = vmatpush1.bf16.xpose.msra.mxu0 0
        %1448 = vmatprep.subr.bf16.mxu0 0
        %1449 = vmatpush1.bf16.xpose.msra.mxu0 0
        %1450 = vmatprep.subr.bf16.mxu0 0
        %1451 = vmatpush1.bf16.xpose.msra.mxu0 0
        %1452 = vmatprep.subr.bf16.mxu0 0
        %1453 = vmatpush1.bf16.xpose.msra.mxu0 0
        %1454 = vmatprep.mubr.bf16.mxu0 0
        %1455 = vmatmul.mubr.bf16.gmra.mrb[0].mxu0 %v1417
        %v1456 = vpop.f32.mrb[0].mxu0
        %v1457 = vadd.f32 0.0, %v1456
        %v1458 = vpop.f32.mrb[0].mxu0
        %v1459 = vpop.f32.mrb[0].mxu0
        %v1460 = vpop.f32.mrb[0].mxu0
        %1461 = vdwg.mxu0
        %v1462 = vsel %vm1238, %v1457, -inf
        %1463 = vmax.xlane.f32.xlu0 %v1462
        %v1464 = vpop.xlane.xlu0 %1463
        %v1465 = vsub.f32 %v1457, %v1464
        %v1466 = vmul.f32 %v1465, 1.442695
        %v1467 = vpow.pop %v1466
        %v1468 = vsel %vm1238, %v1467, 0.0
        %1469 = vadd.xlane.f32.xlu0 %v1468
        %v1470 = vpop.xlane.xlu0 %1469
        %v1471 = vrcp.pop %v1470
        %v1472 = vmul.f32 %v1467, %v1471
        %v1473 = vpack.c.bf16 %v1472, %v1472
        %1474 = vrot.lane.b32.xlu0 %v1190, 112
        %v1475 = vpop.permute.xlu0 %1474
        %v1478 = vsel %vm1238, %v1473, 0
        %1480 = vmatprep.subr.bf16.mxu0 0
        %1481 = vmatpush1.bf16.msra.mxu0 %v1475
        %1482 = vmatprep.subr.bf16.mxu0 0
        %1483 = vmatpush1.bf16.msra.mxu0 0
        %1484 = vmatprep.subr.bf16.mxu0 0
        %1485 = vmatpush1.bf16.msra.mxu0 0
        %1486 = vmatprep.subr.bf16.mxu0 0
        %1487 = vmatpush1.bf16.msra.mxu0 0
        %1488 = vmatprep.subr.bf16.mxu0 0
        %1489 = vmatpush1.bf16.msra.mxu0 0
        %1490 = vmatprep.subr.bf16.mxu0 0
        %1491 = vmatpush1.bf16.msra.mxu0 0
        %1492 = vmatprep.subr.bf16.mxu0 0
        %1493 = vmatpush1.bf16.msra.mxu0 0
        %1494 = vmatprep.subr.bf16.mxu0 0
        %1495 = vmatpush1.bf16.msra.mxu0 0
        %1496 = vmatprep.subr.bf16.mxu0 0
        %1497 = vmatpush1.bf16.msra.mxu0 0
        %1498 = vmatprep.subr.bf16.mxu0 0
        %1499 = vmatpush1.bf16.msra.mxu0 0
        %1500 = vmatprep.subr.bf16.mxu0 0
        %1501 = vmatpush1.bf16.msra.mxu0 0
        %1502 = vmatprep.subr.bf16.mxu0 0
        %1503 = vmatpush1.bf16.msra.mxu0 0
        %1504 = vmatprep.subr.bf16.mxu0 0
        %1505 = vmatpush1.bf16.msra.mxu0 0
        %1506 = vmatprep.subr.bf16.mxu0 0
        %1507 = vmatpush1.bf16.msra.mxu0 0
        %1508 = vmatprep.subr.bf16.mxu0 0
        %1509 = vmatpush1.bf16.msra.mxu0 0
        %1510 = vmatprep.subr.bf16.mxu0 0
        %1511 = vmatpush1.bf16.msra.mxu0 0
        %1512 = vmatprep.mubr.bf16.mxu0 0
        %1513 = vmatmul.mubr.bf16.gmra.mrb[0].mxu0 %v1478
        %v1514 = vpop.f32.mrb[0].mxu0
        %v1515 = vadd.f32 0.0, %v1514
        %v1516 = vpop.f32.mrb[0].mxu0
        %v1517 = vpop.f32.mrb[0].mxu0
        %v1518 = vpop.f32.mrb[0].mxu0
        %1519 = vdwg.mxu0
        %1521 = vrot.lane.b32.xlu0 %v1515, 16
        %v1522 = vpop.permute.xlu0 %1521
        %vm1524 = vcmask 195712
        %1525 = vst.msk [vmem:[#allocation4] sm:$0xff] %vm1524, %v1522
        %1526 = vrot.lane.b32.xlu0 %v1188, 104
        %v1527 = vpop.permute.xlu0 %1526
        %1528 = vrot.lane.b32.xlu0 %v1189, 104
        %v1529 = vpop.permute.xlu0 %1528
        %v1531 = vsel %vm1191, %v1527, 0
        %v1534 = vsel %vm1191, %v1529, 0
        %1536 = vmatprep.subr.bf16.mxu0 0
        %1537 = vmatpush1.bf16.xpose.msra.mxu0 %v1534
        %1538 = vmatprep.subr.bf16.mxu0 0
        %1539 = vmatpush1.bf16.xpose.msra.mxu0 0
        %1540 = vmatprep.subr.bf16.mxu0 0
        %1541 = vmatpush1.bf16.xpose.msra.mxu0 0
        %1542 = vmatprep.subr.bf16.mxu0 0
        %1543 = vmatpush1.bf16.xpose.msra.mxu0 0
        %1544 = vmatprep.subr.bf16.mxu0 0
        %1545 = vmatpush1.bf16.xpose.msra.mxu0 0
        %1546 = vmatprep.subr.bf16.mxu0 0
        %1547 = vmatpush1.bf16.xpose.msra.mxu0 0
        %1548 = vmatprep.subr.bf16.mxu0 0
        %1549 = vmatpush1.bf16.xpose.msra.mxu0 0
        %1550 = vmatprep.subr.bf16.mxu0 0
        %1551 = vmatpush1.bf16.xpose.msra.mxu0 0
        %1552 = vmatprep.subr.bf16.mxu0 0
        %1553 = vmatpush1.bf16.xpose.msra.mxu0 0
        %1554 = vmatprep.subr.bf16.mxu0 0
        %1555 = vmatpush1.bf16.xpose.msra.mxu0 0
        %1556 = vmatprep.subr.bf16.mxu0 0
        %1557 = vmatpush1.bf16.xpose.msra.mxu0 0
        %1558 = vmatprep.subr.bf16.mxu0 0
        %1559 = vmatpush1.bf16.xpose.msra.mxu0 0
        %1560 = vmatprep.subr.bf16.mxu0 0
        %1561 = vmatpush1.bf16.xpose.msra.mxu0 0
        %1562 = vmatprep.subr.bf16.mxu0 0
        %1563 = vmatpush1.bf16.xpose.msra.mxu0 0
        %1564 = vmatprep.subr.bf16.mxu0 0
        %1565 = vmatpush1.bf16.xpose.msra.mxu0 0
        %1566 = vmatprep.subr.bf16.mxu0 0
        %1567 = vmatpush1.bf16.xpose.msra.mxu0 0
        %1568 = vmatprep.mubr.bf16.mxu0 0
        %1569 = vmatmul.mubr.bf16.gmra.mrb[0].mxu0 %v1531
        %v1570 = vpop.f32.mrb[0].mxu0
        %v1571 = vadd.f32 0.0, %v1570
        %v1572 = vpop.f32.mrb[0].mxu0
        %v1573 = vpop.f32.mrb[0].mxu0
        %v1574 = vpop.f32.mrb[0].mxu0
        %1575 = vdwg.mxu0
        %v1576 = vsel %vm1238, %v1571, -inf
        %1577 = vmax.xlane.f32.xlu0 %v1576
        %v1578 = vpop.xlane.xlu0 %1577
        %v1579 = vsub.f32 %v1571, %v1578
        %v1580 = vmul.f32 %v1579, 1.442695
        %v1581 = vpow.pop %v1580
        %v1582 = vsel %vm1238, %v1581, 0.0
        %1583 = vadd.xlane.f32.xlu0 %v1582
        %v1584 = vpop.xlane.xlu0 %1583
        %v1585 = vrcp.pop %v1584
        %v1586 = vmul.f32 %v1581, %v1585
        %v1587 = vpack.c.bf16 %v1586, %v1586
        %1588 = vrot.lane.b32.xlu0 %v1190, 104
        %v1589 = vpop.permute.xlu0 %1588
        %v1592 = vsel %vm1238, %v1587, 0
        %1594 = vmatprep.subr.bf16.mxu0 0
        %1595 = vmatpush1.bf16.msra.mxu0 %v1589
        %1596 = vmatprep.subr.bf16.mxu0 0
        %1597 = vmatpush1.bf16.msra.mxu0 0
        %1598 = vmatprep.subr.bf16.mxu0 0
        %1599 = vmatpush1.bf16.msra.mxu0 0
        %1600 = vmatprep.subr.bf16.mxu0 0
        %1601 = vmatpush1.bf16.msra.mxu0 0
        %1602 = vmatprep.subr.bf16.mxu0 0
        %1603 = vmatpush1.bf16.msra.mxu0 0
        %1604 = vmatprep.subr.bf16.mxu0 0
        %1605 = vmatpush1.bf16.msra.mxu0 0
        %1606 = vmatprep.subr.bf16.mxu0 0
        %1607 = vmatpush1.bf16.msra.mxu0 0
        %1608 = vmatprep.subr.bf16.mxu0 0
        %1609 = vmatpush1.bf16.msra.mxu0 0
        %1610 = vmatprep.subr.bf16.mxu0 0
        %1611 = vmatpush1.bf16.msra.mxu0 0
        %1612 = vmatprep.subr.bf16.mxu0 0
        %1613 = vmatpush1.bf16.msra.mxu0 0
        %1614 = vmatprep.subr.bf16.mxu0 0
        %1615 = vmatpush1.bf16.msra.mxu0 0
        %1616 = vmatprep.subr.bf16.mxu0 0
        %1617 = vmatpush1.bf16.msra.mxu0 0
        %1618 = vmatprep.subr.bf16.mxu0 0
        %1619 = vmatpush1.bf16.msra.mxu0 0
        %1620 = vmatprep.subr.bf16.mxu0 0
        %1621 = vmatpush1.bf16.msra.mxu0 0
        %1622 = vmatprep.subr.bf16.mxu0 0
        %1623 = vmatpush1.bf16.msra.mxu0 0
        %1624 = vmatprep.subr.bf16.mxu0 0
        %1625 = vmatpush1.bf16.msra.mxu0 0
        %1626 = vmatprep.mubr.bf16.mxu0 0
        %1627 = vmatmul.mubr.bf16.gmra.mrb[0].mxu0 %v1592
        %v1628 = vpop.f32.mrb[0].mxu0
        %v1629 = vadd.f32 0.0, %v1628
        %v1630 = vpop.f32.mrb[0].mxu0
        %v1631 = vpop.f32.mrb[0].mxu0
        %v1632 = vpop.f32.mrb[0].mxu0
        %1633 = vdwg.mxu0
        %1635 = vrot.lane.b32.xlu0 %v1629, 24
        %v1636 = vpop.permute.xlu0 %1635
        %vm1638 = vcmask 261312
        %1639 = vst.msk [vmem:[#allocation4] sm:$0xff] %vm1638, %v1636
        %v1640 = vld [vmem:[#allocation4] sm:$0xff]
        %v1641 = vld [vmem:[#allocation25] sm:$0x1]
        %v1642 = vld [vmem:[#allocation26] sm:$0x1]
        %v1643 = vld [vmem:[%s17] sm:$0xf]
        %v1644 = vld [vmem:[%s17 + $0x4] sm:$0xf]
        %v1645 = vld [vmem:[%s17 + $0x8] sm:$0xf]
        %v1646 = vld [vmem:[%s17 + $0xc] sm:$0xf]
        %v1647 = vld [vmem:[%s18] sm:$0x1]
        %v1648 = vsel %vm1097, %v1640, 0.0
        %1649 = vadd.xlane.f32.xlu0 %v1648
        %v1650 = vpop.xlane.xlu0 %1649
        %v1651 = vmul.f32 %v1650, %v1101
        %v1652 = vsub.f32 %v1640, %v1651
        %v1653 = vmul.f32 %v1652, %v1652
        %v1654 = vsel %vm1097, %v1653, 0.0
        %1655 = vadd.xlane.f32.xlu0 %v1654
        %v1656 = vpop.xlane.xlu0 %1655
        %v1657 = vmul.f32 %v1656, %v1101
        %v1658 = vadd.f32 %v1657, 1e-05
        %v1659 = vrsqrt.pop %v1658
        %v1660 = vmul.f32 %v1652, %v1659
        %v1662 = vlaneseq
        %v1663 = vshrl.u32 %v1662, 7
        %v1664 = vsub.s32 0, %v1663
        %v1665 = vrot.slane %v1641, %v1664
        %v1667 = vmul.f32 %v1660, %v1665
        %v1669 = vlaneseq
        %v1670 = vshrl.u32 %v1669, 7
        %v1671 = vsub.s32 0, %v1670
        %v1672 = vrot.slane %v1642, %v1671
        %v1674 = vadd.f32 %v1667, %v1672
        %v1675 = vpack.c.bf16 %v1674, %v1674
        %v1677 = vlaneseq
        %v1678 = vshrl.u32 %v1677, 7
        %v1679 = vsub.s32 0, %v1678
        %v1680 = vrot.slane %v1647, %v1679
        %v1686 = vunpack.c.l.b16 %v1643
        %v1687 = vunpack.c.l.b16 %v1644
        %v1688 = vunpack.c.l.b16 %v1645
        %v1689 = vunpack.c.l.b16 %v1646
        %v1690 = vpack.c.b16 %v1687, %v1686
        %v1691 = vpack.c.b16 %v1689, %v1688
        %v1695 = vsel %vm1097, %v1675, 0
        %1697 = vmatprep.subr.bf16.mxu0 0
        %1698 = vmatpush1.bf16.msra.mxu0 %v1690
        %1699 = vmatprep.subr.bf16.mxu0 0
        %1700 = vmatpush1.bf16.msra.mxu0 %v1691
        %1701 = vmatprep.subr.bf16.mxu0 0
        %1702 = vmatpush1.bf16.msra.mxu0 0
        %1703 = vmatprep.subr.bf16.mxu0 0
        %1704 = vmatpush1.bf16.msra.mxu0 0
        %1705 = vmatprep.subr.bf16.mxu0 0
        %1706 = vmatpush1.bf16.msra.mxu0 0
        %1707 = vmatprep.subr.bf16.mxu0 0
        %1708 = vmatpush1.bf16.msra.mxu0 0
        %1709 = vmatprep.subr.bf16.mxu0 0
        %1710 = vmatpush1.bf16.msra.mxu0 0
        %1711 = vmatprep.subr.bf16.mxu0 0
        %1712 = vmatpush1.bf16.msra.mxu0 0
        %1713 = vmatprep.subr.bf16.mxu0 0
        %1714 = vmatpush1.bf16.msra.mxu0 0
        %1715 = vmatprep.subr.bf16.mxu0 0
        %1716 = vmatpush1.bf16.msra.mxu0 0
        %1717 = vmatprep.subr.bf16.mxu0 0
        %1718 = vmatpush1.bf16.msra.mxu0 0
        %1719 = vmatprep.subr.bf16.mxu0 0
        %1720 = vmatpush1.bf16.msra.mxu0 0
        %1721 = vmatprep.subr.bf16.mxu0 0
        %1722 = vmatpush1.bf16.msra.mxu0 0
        %1723 = vmatprep.subr.bf16.mxu0 0
        %1724 = vmatpush1.bf16.msra.mxu0 0
        %1725 = vmatprep.subr.bf16.mxu0 0
        %1726 = vmatpush1.bf16.msra.mxu0 0
        %1727 = vmatprep.subr.bf16.mxu0 0
        %1728 = vmatpush1.bf16.msra.mxu0 0
        %1729 = vmatprep.mubr.bf16.mxu0 0
        %1730 = vmatmul.mubr.bf16.gmra.mrb[0].mxu0 %v1695
        %v1731 = vpop.f32.mrb[0].mxu0
        %v1732 = vadd.f32 %v1680, %v1731
        %v1733 = vpop.f32.mrb[0].mxu0
        %v1734 = vpop.f32.mrb[0].mxu0
        %v1735 = vpop.f32.mrb[0].mxu0
        %1736 = vdwg.mxu0
        %1737 = vst.msk [vmem:[%s849] sm:$0xff] %vm1097, %v1732
        %s1738 = sand.u32 %s483, 1
        %s1739 = scalar_lea.sflag [#allocation7], %s1738
        %s1740 = sand.u32 %s483, 1
        %s1741 = smul.addr %s1740, 8
        %s1742 = scalar_lea.vmem [#allocation28], %s1741
        // Predicated region
        $region157: #{tpu_custom_call.1} parent=95 // pred_check
          %p1743 = pneg %p493
        $region158: #{tpu_custom_call.1} parent=95 // pred_check_branch
          %1745 = sbr.rel (%p1743) target = $region160
        $region159: #{tpu_custom_call.1} parent=95 // pred_region
          %s1747 = ssub.s32 128, 128
          %1748 = vsyncadd %s1739, %s1747
          %s1749 = sadd.s32 %s50, %s49
          %s1750 = smul.addr %s1749, 128
          %s1751 = scalar_lea.hbm %s19, %s1750
          %s1753 = sshll.u32 %s1742, 4
          %s1754 = int_to_ptr.vmem [resolvable:$true] %s1753
          %1756 = dma.vmem_to_hbm [thread:$0]  %s1754, 128, %s1751, %s1739
        $region160: #{tpu_custom_call.1} parent=95 // pred_fallthru
          _
      $region96: #{tpu_custom_call.1} parent=5 // pred_fallthru
        _
      %p1757 = scmp.le.s32.totalorder 2, %s40
      // Predicated region
      $region161: #{tpu_custom_call.1} parent=5 // pred_check
        %p1758 = pneg %p1757
      $region162: #{tpu_custom_call.1} parent=5 // pred_check_branch
        %1760 = sbr.rel (%p1758) target = $region164
      $region163: #{tpu_custom_call.1} parent=5 // pred_region
        %s1761 = ssub.s32 %s40, 2
        // Predicated region
        $region165: #{tpu_custom_call.1} parent=163 // pred_check
          %p1762 = pneg %p499
        $region166: #{tpu_custom_call.1} parent=163 // pred_check_branch
          %1764 = sbr.rel (%p1762) target = $region168
        $region167: #{tpu_custom_call.1} parent=163 // pred_region
          %s1765 = sand.u32 %s484, 1
          %s1766 = scalar_lea.sflag [#allocation7], %s1765
          %s1767 = sand.u32 %s484, 1
          %s1768 = smul.addr %s1767, 8
          %s1769 = scalar_lea.vmem [#allocation28], %s1768
          %1770 = dma.done %s1766, 128
        $region168: #{tpu_custom_call.1} parent=163 // pred_fallthru
          _
      $region164: #{tpu_custom_call.1} parent=5 // pred_fallthru
        _
    $region6: #{tpu_custom_call.1} parent=1 // loop_footer
      %s44 = sadd.s32 1, %s40
    $region7: #{tpu_custom_call.1} parent=1 // loop_footer_branch
      %39 = sbr.rel target = $region3
    $region8: #{tpu_custom_call.1} parent=1 // loop_exit
      _
    %1771 = vsyncpa [#allocation6], 1
    %s1772 = scalar_lea.sflag [#allocation6], 1
    %1773 = vsyncpa %s1772, 1
    %1774 = vsyncpa [#allocation9], 1
    %s1775 = scalar_lea.sflag [#allocation9], 1
    %1776 = vsyncpa %s1775, 1
    %1777 = vsyncpa [#allocation12], 1
    %1778 = vsyncpa [#allocation15], 1
    %1779 = vsyncpa [#allocation18], 1
    %1780 = vsyncpa [#allocation21], 1
    %1781 = vsyncpa [#allocation24], 1
    %1782 = vsyncpa [#allocation27], 1
    %1783 = vsyncpa [#allocation7], 1
    %s1784 = scalar_lea.sflag [#allocation7], 1
    %1785 = vsyncpa %s1784, 1

</llo_original>
